<compile_context>
chip_gen: v7x
topology: tpu7x:2x2x1
jax: 0.10.0
libtpu: 0.0.40
codegen_flags: <defaults>
</compile_context>

<pallas_src>
import math
import jax
import jax.numpy as jnp
from jax.experimental import pallas as pl
from jax.experimental.pallas import tpu as pltpu


# ---------------------------------------------------------------------------
# Pallas kernel
# ---------------------------------------------------------------------------
def _make_kan_kernel(knots, spline_order, grid_h, nb, n_taps, compute_dtype):
    """knots: static Python floats (uniform KAN grid incl. spline_order padding)."""
    knots = [float(t) for t in knots]
    n_knots = len(knots)
    grid_h = float(grid_h)
    kp = 8 * n_taps                      # packed rows per slab (8 columns x K taps)

    def kernel(x_ref, w_ref, o_ref, slab_ref):
        # x_ref    : (kp, TG)                 packed patch features
        # w_ref    : (8*n_convs, (1+nb)*kp)   block-diagonal fused weights
        # o_ref    : (8*n_convs, TG)
        # slab_ref : ((1+nb)*kp, TG)          VMEM scratch: SiLU slab + nb basis slabs
        x = x_ref[...]
        if x.dtype != compute_dtype:
            x = x.astype(compute_dtype)           # gated bf16 elementwise path

        # slab 0: SiLU(x)  (base-activation term); sigmoid -> EUP, mul -> VALU
        slab_ref[pl.ds(0, kp), :] = (x * jax.nn.sigmoid(x)).astype(slab_ref.dtype)

        # Shared (x - knot_j) differences, reused by every recursion level.
        d = [x - knots[j] for j in range(n_knots)]

        # Degree-1 bases directly as (un-normalized) hat functions:
        #   C1_j(x) = max(0, h - |x - knots[j+1]|)  ==  h * B1_j(x)
        # (matches the half-open indicator recursion exactly, incl. zeros
        #  outside the grid).
        bases = [jnp.maximum(grid_h - jnp.abs(d[j + 1]), 0.0)
                 for j in range(n_knots - 2)]

        # Un-normalized Cox-de Boor for k = 2..order:
        #   Ck_j = (x - t_j)*C_j + (t_{j+k+1} - x)*C_{j+1}
        #        =  d_j*C_j - d_{j+k+1}*C_{j+1}        (3 VALU ops / basis)
        # The cumulative 1/(order! * h^order) factor is folded into the
        # spline weights host-side.
        for k in range(2, spline_order + 1):
            bases = [d[j] * bases[j] - d[j + k + 1] * bases[j + 1]
                     for j in range(len(bases) - 1)]
        # len(bases) == nb == grid_size + spline_order

        for j in range(nb):
            slab_ref[pl.ds((1 + j) * kp, kp), :] = bases[j].astype(slab_ref.dtype)

        # Single fused MXU matmul over all slabs (contraction dim (1+nb)*kp).
        o_ref[...] = jnp.dot(w_ref[...], slab_ref[...],
                             preferred_element_type=jnp.float32)

    return kernel


# ---------------------------------------------------------------------------
# Glue: unfold (patch extraction, K-major), packing, pallas_call
# ---------------------------------------------------------------------------
def _extract_patches(x, kernel_side, stride, padding, dilation):
    """torch.nn.Unfold equivalent, K-major.
    x: (B, C, H, W). Returns ((K, B, C, h_out, w_out), h_out, w_out)."""
    B, C, H, W = x.shape
    h_out = (H + 2 * padding[0] - dilation[0] * (kernel_side - 1) - 1) // stride[0] + 1
    w_out = (W + 2 * padding[1] - dilation[1] * (kernel_side - 1) - 1) // stride[1] + 1
    xp = jnp.pad(x, ((0, 0), (0, 0), (padding[0], padding[0]), (padding[1], padding[1])))
    cols = []
    for ki in range(kernel_side):          # row-major kernel ordering == Unfold
        for kj in range(kernel_side):
            r0 = ki * dilation[0]
            c0 = kj * dilation[1]
            sl = xp[:, :,
                    r0:r0 + stride[0] * (h_out - 1) + 1:stride[0],
                    c0:c0 + stride[1] * (w_out - 1) + 1:stride[1]]
            cols.append(sl)
    patches = jnp.stack(cols, axis=0)      # (K, B, C, h_out, w_out)
    return patches, h_out, w_out


def kan_convolutional_layer_forward(
    x, base_w, spline_w, spline_scaler, *,
    kernel_size=(3, 3), stride=(1, 1), padding=(0, 0), dilation=(1, 1),
    grid_size=5, spline_order=3, grid_range=(-1.0, 1.0),
    max_tile_lanes=512, use_bf16_elementwise=False,
):
    """x: (B, C, H, W) float32 (NCHW).  Params per conv head (out_features == 1):
       base_w        : (n_convs, K)
       spline_w      : (n_convs, K, grid_size + spline_order)
       spline_scaler : (n_convs, K)
    Returns (B, C*n_convs, h_out, w_out) float32."""
    assert kernel_size[0] == kernel_size[1], "only square kernels are supported"
    assert spline_order >= 1
    x = x.astype(jnp.float32)
    B, C, H, W = x.shape
    ks = kernel_size[0]
    K = ks * ks
    n_convs = base_w.shape[0]
    nb = grid_size + spline_order
    KP = 8 * K                               # packed rows per slab (multiple of 8)
    n_slabs = 1 + nb
    # bf16 elementwise only helps on v6e/v7x (bf16 VPU/EUP); relaxes accuracy.
    compute_dtype = jnp.bfloat16 if use_bf16_elementwise else jnp.float32

    patches, h_out, w_out = _extract_patches(x, ks, stride, padding, dilation)
    L = h_out * w_out
    M = B * C * L

    # Lane tile over 8-column groups; keep >= 4 grid steps when there is enough
    # work (>= 2 "parallel" steps per v7x TensorCore), lane width >= 128.
    G = -(-M // 8)
    tile_g = max(128, (max_tile_lanes // 128) * 128)
    while tile_g > 128 and -(-G // tile_g) < 4:
        tile_g //= 2
    G_pad = -(-G // tile_g) * tile_g
    M_pad = G_pad * 8

    # Pack: column group g, local position l, tap k  ->  X_packed[l*K + k, g].
    # Padded columns map to output positions >= M and are sliced off later.
    Xm = patches.reshape(K, M)
    Xm = jnp.pad(Xm, ((0, 0), (0, M_pad - M)))
    Xp = Xm.reshape(K, G_pad, 8).transpose(2, 0, 1).reshape(KP, G_pad)

    # Static uniform KAN grid knots.
    h = (grid_range[1] - grid_range[0]) / grid_size
    knots = [grid_range[0] + (i - spline_order) * h
             for i in range(grid_size + 2 * spline_order + 1)]
    # Fold the skipped Cox-de Boor normalization (order! * h^order) into weights.
    norm = math.factorial(spline_order) * (h ** spline_order)
    sw_scaled = (spline_w * spline_scaler[..., None]).astype(jnp.float32) / norm

    # Fused block-diagonal weight:
    #   row = local*n_convs + conv,  col = slab*KP + local*K + tap
    w_slab = jnp.concatenate(
        [base_w.astype(jnp.float32)[None],              # (1, n_convs, K)  SiLU slab
         jnp.transpose(sw_scaled, (2, 0, 1))], axis=0)   # (nb, n_convs, K) spline slabs
    Wf = jnp.einsum('lm,sck->lcsmk', jnp.eye(8, dtype=jnp.float32), w_slab)
    Wf = Wf.reshape(8 * n_convs, n_slabs * KP)

    kernel = _make_kan_kernel(knots, spline_order, h, nb, K, compute_dtype)

    grid_steps = G_pad // tile_g
    ew_ops = 12 + 7 * (grid_size + 2 * spline_order)     # rough VALU ops / element
    cost = pl.CostEstimate(
        flops=int(G_pad * (KP * ew_ops + 2 * 8 * n_convs * n_slabs * KP)),
        transcendentals=int(G_pad * KP),
        bytes_accessed=int(4 * (KP * G_pad + 8 * n_convs * n_slabs * KP
                                + 8 * n_convs * G_pad)),
    )

    y = pl.pallas_call(
        kernel,
        out_shape=jax.ShapeDtypeStruct((8 * n_convs, G_pad), jnp.float32),
        grid_spec=pltpu.PrefetchScalarGridSpec(
            num_scalar_prefetch=0,
            grid=(grid_steps,),
            in_specs=[
                pl.BlockSpec((KP, tile_g), lambda i: (0, i)),
                pl.BlockSpec((8 * n_convs, n_slabs * KP), lambda i: (0, 0)),
            ],
            out_specs=pl.BlockSpec((8 * n_convs, tile_g), lambda i: (0, i)),
            scratch_shapes=[pltpu.VMEM((n_slabs * KP, tile_g), jnp.float32)],
        ),
        compiler_params=pltpu.CompilerParams(dimension_semantics=("parallel",)),
        cost_estimate=cost,
    )(Xp, Wf)

    # Un-interleave the 8-column groups, restore torch channel ordering
    # (out_channel = channel*n_convs + conv_index).
    y = y.reshape(8, n_convs, G_pad).transpose(1, 2, 0).reshape(n_convs, M_pad)
    y = y[:, :M].reshape(n_convs, B, C, L)
    y = jnp.transpose(y, (1, 2, 0, 3))                    # (B, C, n_convs, L)
    return y.reshape(B, C * n_convs, h_out, w_out)


# ---------------------------------------------------------------------------
# Pure-JAX reference (same math as efficient-kan KANLinear).  Uses only
# elementwise ops + VPU reductions (no MXU matmul) so it is f32-exact.
# ---------------------------------------------------------------------------
def _reference_forward(x, base_w, spline_w, spline_scaler, *,
                       kernel_size, stride, padding, dilation,
                       grid_size, spline_order, grid_range):
    ks = kernel_size[0]
    K = ks * ks
    n_convs = base_w.shape[0]
    B, C, _, _ = x.shape

    patches, h_out, w_out = _extract_patches(x.astype(jnp.float32), ks, stride,
                                             padding, dilation)
    Xn = patches.reshape(K, -1).T                        # (M, K)

    h = (grid_range[1] - grid_range[0]) / grid_size
    knots = jnp.array([grid_range[0] + (i - spline_order) * h
                       for i in range(grid_size + 2 * spline_order + 1)], jnp.float32)
    xe = Xn[:, :, None]
    bases = ((xe >= knots[:-1]) & (xe < knots[1:])).astype(jnp.float32)
    for k in range(1, spline_order + 1):
        bases = ((xe - knots[: -(k + 1)]) / (knots[k:-1] - knots[: -(k + 1)]) * bases[:, :, :-1]
                 + (knots[k + 1:] - xe) / (knots[k + 1:] - knots[1:-k]) * bases[:, :, 1:])
    # bases: (M, K, nb)
    sw = spline_w * spline_scaler[..., None]             # (n_convs, K, nb)
    silu = Xn * jax.nn.sigmoid(Xn)
    base_out = jnp.sum(silu[:, None, :] * base_w[None, :, :], axis=-1)            # (M, n_convs)
    spline_out = jnp.sum(bases[:, None, :, :] * sw[None, :, :, :], axis=(2, 3))   # (M, n_convs)
    y = (base_out + spline_out).T                        # (n_convs, M)
    y = y.reshape(n_convs, B, C, h_out * w_out)
    y = jnp.transpose(y, (1, 2, 0, 3))
    return y.reshape(B, C * n_convs, h_out, w_out)


# ---------------------------------------------------------------------------
if __name__ == "__main__":
    # module config (KAN_Convolutional_Layer)
    n_convs = 2
    kernel_size = (3, 3)
    stride = (1, 1)
    padding = (0, 0)
    dilation = (1, 1)
    grid_size = 5
    spline_order = 3
    grid_range = (-1.0, 1.0)
    K = kernel_size[0] * kernel_size[1]
    nb = grid_size + spline_order

    key = jax.random.PRNGKey(0)
    kx, kb, ks_, kc = jax.random.split(key, 4)

    # input: NCHW, small shapes
    x = jax.random.normal(kx, (2, 4, 16, 16), jnp.float32)

    # deterministic synthetic KANLinear parameters (out_features = 1 per conv head)
    base_w = 0.5 * jax.random.normal(kb, (n_convs, K), jnp.float32)
    spline_w = 0.5 * jax.random.normal(ks_, (n_convs, K, nb), jnp.float32)
    spline_scaler = 0.5 * jax.random.normal(kc, (n_convs, K), jnp.float32)

    out = kan_convolutional_layer_forward(
        x, base_w, spline_w, spline_scaler,
        kernel_size=kernel_size, stride=stride, padding=padding, dilation=dilation,
        grid_size=grid_size, spline_order=spline_order, grid_range=grid_range,
    )
    out = jax.block_until_ready(out)

    ref = _reference_forward(
        x, base_w, spline_w, spline_scaler,
        kernel_size=kernel_size, stride=stride, padding=padding, dilation=dilation,
        grid_size=grid_size, spline_order=spline_order, grid_range=grid_range,
    )
    ref = jax.block_until_ready(ref)

    assert out.shape == (2, 4 * n_convs, 14, 14), out.shape
    err = float(jnp.max(jnp.abs(out - ref)))
    assert err < 2e-4, err
    print("KERNEL_OK")
</pallas_src>

<mosaic_0001>
module attributes {stable_mosaic.version = 11 : i64} {
  func.func @kernel(%arg0: i32, %arg1: memref<72x128xf32, #tpu.memory_space<vmem>>, %arg2: memref<16x648xf32, #tpu.memory_space<vmem>>, %arg3: memref<16x128xf32, #tpu.memory_space<vmem>>, %arg4: memref<648x128xf32, #tpu.memory_space<vmem>>) attributes {dimension_semantics = [#tpu.dimension_semantics<parallel>], iteration_bounds = array<i64: 2>, scalar_prefetch = 0 : i64, scratch_operands = 1 : i64, tpu.core_type = #tpu.core_type<tc>, window_params = [{transform_indices = @transform_0, window_bounds = array<i64: 72, 128>}, {pipeline_mode = #tpu.pipeline_mode<synchronous>, transform_indices = @transform_1, window_bounds = array<i64: 16, 648>}, {transform_indices = @transform_2, window_bounds = array<i64: 16, 128>}]} {
    %c0 = arith.constant 0 : index
    %c0_0 = arith.constant 0 : index
    %0 = vector.load %arg1[%c0, %c0_0] : memref<72x128xf32, #tpu.memory_space<vmem>>, vector<72x128xf32>
    %1 = arith.negf %0 : vector<72x128xf32>
    %2 = math.exp %1 : vector<72x128xf32>
    %cst = arith.constant 1.000000e+00 : f32
    %3 = vector.broadcast %cst : f32 to vector<72x128xf32>
    %4 = arith.addf %3, %2 : vector<72x128xf32>
    %5 = arith.divf %3, %4 : vector<72x128xf32>
    %6 = arith.mulf %0, %5 : vector<72x128xf32>
    %c0_1 = arith.constant 0 : index
    %c0_2 = arith.constant 0 : index
    %7 = vector.load %arg4[%c0_1, %c0_2] : memref<648x128xf32, #tpu.memory_space<vmem>>, vector<72x128xf32>
    tpu.vector_store %arg4[%c0_1, %c0_2], %6 {strides = array<i32>} : memref<648x128xf32, #tpu.memory_space<vmem>>, vector<72x128xf32>,
    %cst_3 = arith.constant -2.200000e+00 : f32
    %8 = vector.broadcast %cst_3 : f32 to vector<72x128xf32>
    %9 = arith.subf %0, %8 : vector<72x128xf32>
    %cst_4 = arith.constant -1.800000e+00 : f32
    %10 = vector.broadcast %cst_4 : f32 to vector<72x128xf32>
    %11 = arith.subf %0, %10 : vector<72x128xf32>
    %cst_5 = arith.constant -1.400000e+00 : f32
    %12 = vector.broadcast %cst_5 : f32 to vector<72x128xf32>
    %13 = arith.subf %0, %12 : vector<72x128xf32>
    %cst_6 = arith.constant -1.000000e+00 : f32
    %14 = vector.broadcast %cst_6 : f32 to vector<72x128xf32>
    %15 = arith.subf %0, %14 : vector<72x128xf32>
    %cst_7 = arith.constant -6.000000e-01 : f32
    %16 = vector.broadcast %cst_7 : f32 to vector<72x128xf32>
    %17 = arith.subf %0, %16 : vector<72x128xf32>
    %cst_8 = arith.constant -2.000000e-01 : f32
    %18 = vector.broadcast %cst_8 : f32 to vector<72x128xf32>
    %19 = arith.subf %0, %18 : vector<72x128xf32>
    %cst_9 = arith.constant 2.000000e-01 : f32
    %20 = vector.broadcast %cst_9 : f32 to vector<72x128xf32>
    %21 = arith.subf %0, %20 : vector<72x128xf32>
    %cst_10 = arith.constant 6.000000e-01 : f32
    %22 = vector.broadcast %cst_10 : f32 to vector<72x128xf32>
    %23 = arith.subf %0, %22 : vector<72x128xf32>
    %cst_11 = arith.constant 1.000000e+00 : f32
    %24 = vector.broadcast %cst_11 : f32 to vector<72x128xf32>
    %25 = arith.subf %0, %24 : vector<72x128xf32>
    %cst_12 = arith.constant 1.400000e+00 : f32
    %26 = vector.broadcast %cst_12 : f32 to vector<72x128xf32>
    %27 = arith.subf %0, %26 : vector<72x128xf32>
    %cst_13 = arith.constant 1.800000e+00 : f32
    %28 = vector.broadcast %cst_13 : f32 to vector<72x128xf32>
    %29 = arith.subf %0, %28 : vector<72x128xf32>
    %cst_14 = arith.constant 2.200000e+00 : f32
    %30 = vector.broadcast %cst_14 : f32 to vector<72x128xf32>
    %31 = arith.subf %0, %30 : vector<72x128xf32>
    %32 = math.absf %11 : vector<72x128xf32>
    %cst_15 = arith.constant 4.000000e-01 : f32
    %33 = vector.broadcast %cst_15 : f32 to vector<72x128xf32>
    %34 = arith.subf %33, %32 : vector<72x128xf32>
    %cst_16 = arith.constant 0.000000e+00 : f32
    %35 = vector.broadcast %cst_16 : f32 to vector<72x128xf32>
    %36 = arith.maximumf %34, %35 : vector<72x128xf32>
    %37 = math.absf %13 : vector<72x128xf32>
    %cst_17 = arith.constant 4.000000e-01 : f32
    %38 = vector.broadcast %cst_17 : f32 to vector<72x128xf32>
    %39 = arith.subf %38, %37 : vector<72x128xf32>
    %cst_18 = arith.constant 0.000000e+00 : f32
    %40 = vector.broadcast %cst_18 : f32 to vector<72x128xf32>
    %41 = arith.maximumf %39, %40 : vector<72x128xf32>
    %42 = math.absf %15 : vector<72x128xf32>
    %cst_19 = arith.constant 4.000000e-01 : f32
    %43 = vector.broadcast %cst_19 : f32 to vector<72x128xf32>
    %44 = arith.subf %43, %42 : vector<72x128xf32>
    %cst_20 = arith.constant 0.000000e+00 : f32
    %45 = vector.broadcast %cst_20 : f32 to vector<72x128xf32>
    %46 = arith.maximumf %44, %45 : vector<72x128xf32>
    %47 = math.absf %17 : vector<72x128xf32>
    %cst_21 = arith.constant 4.000000e-01 : f32
    %48 = vector.broadcast %cst_21 : f32 to vector<72x128xf32>
    %49 = arith.subf %48, %47 : vector<72x128xf32>
    %cst_22 = arith.constant 0.000000e+00 : f32
    %50 = vector.broadcast %cst_22 : f32 to vector<72x128xf32>
    %51 = arith.maximumf %49, %50 : vector<72x128xf32>
    %52 = math.absf %19 : vector<72x128xf32>
    %cst_23 = arith.constant 4.000000e-01 : f32
    %53 = vector.broadcast %cst_23 : f32 to vector<72x128xf32>
    %54 = arith.subf %53, %52 : vector<72x128xf32>
    %cst_24 = arith.constant 0.000000e+00 : f32
    %55 = vector.broadcast %cst_24 : f32 to vector<72x128xf32>
    %56 = arith.maximumf %54, %55 : vector<72x128xf32>
    %57 = math.absf %21 : vector<72x128xf32>
    %cst_25 = arith.constant 4.000000e-01 : f32
    %58 = vector.broadcast %cst_25 : f32 to vector<72x128xf32>
    %59 = arith.subf %58, %57 : vector<72x128xf32>
    %cst_26 = arith.constant 0.000000e+00 : f32
    %60 = vector.broadcast %cst_26 : f32 to vector<72x128xf32>
    %61 = arith.maximumf %59, %60 : vector<72x128xf32>
    %62 = math.absf %23 : vector<72x128xf32>
    %cst_27 = arith.constant 4.000000e-01 : f32
    %63 = vector.broadcast %cst_27 : f32 to vector<72x128xf32>
    %64 = arith.subf %63, %62 : vector<72x128xf32>
    %cst_28 = arith.constant 0.000000e+00 : f32
    %65 = vector.broadcast %cst_28 : f32 to vector<72x128xf32>
    %66 = arith.maximumf %64, %65 : vector<72x128xf32>
    %67 = math.absf %25 : vector<72x128xf32>
    %cst_29 = arith.constant 4.000000e-01 : f32
    %68 = vector.broadcast %cst_29 : f32 to vector<72x128xf32>
    %69 = arith.subf %68, %67 : vector<72x128xf32>
    %cst_30 = arith.constant 0.000000e+00 : f32
    %70 = vector.broadcast %cst_30 : f32 to vector<72x128xf32>
    %71 = arith.maximumf %69, %70 : vector<72x128xf32>
    %72 = math.absf %27 : vector<72x128xf32>
    %cst_31 = arith.constant 4.000000e-01 : f32
    %73 = vector.broadcast %cst_31 : f32 to vector<72x128xf32>
    %74 = arith.subf %73, %72 : vector<72x128xf32>
    %cst_32 = arith.constant 0.000000e+00 : f32
    %75 = vector.broadcast %cst_32 : f32 to vector<72x128xf32>
    %76 = arith.maximumf %74, %75 : vector<72x128xf32>
    %77 = math.absf %29 : vector<72x128xf32>
    %cst_33 = arith.constant 4.000000e-01 : f32
    %78 = vector.broadcast %cst_33 : f32 to vector<72x128xf32>
    %79 = arith.subf %78, %77 : vector<72x128xf32>
    %cst_34 = arith.constant 0.000000e+00 : f32
    %80 = vector.broadcast %cst_34 : f32 to vector<72x128xf32>
    %81 = arith.maximumf %79, %80 : vector<72x128xf32>
    %82 = arith.mulf %9, %36 : vector<72x128xf32>
    %83 = arith.mulf %15, %41 : vector<72x128xf32>
    %84 = arith.subf %82, %83 : vector<72x128xf32>
    %85 = arith.mulf %11, %41 : vector<72x128xf32>
    %86 = arith.mulf %17, %46 : vector<72x128xf32>
    %87 = arith.subf %85, %86 : vector<72x128xf32>
    %88 = arith.mulf %13, %46 : vector<72x128xf32>
    %89 = arith.mulf %19, %51 : vector<72x128xf32>
    %90 = arith.subf %88, %89 : vector<72x128xf32>
    %91 = arith.mulf %15, %51 : vector<72x128xf32>
    %92 = arith.mulf %21, %56 : vector<72x128xf32>
    %93 = arith.subf %91, %92 : vector<72x128xf32>
    %94 = arith.mulf %17, %56 : vector<72x128xf32>
    %95 = arith.mulf %23, %61 : vector<72x128xf32>
    %96 = arith.subf %94, %95 : vector<72x128xf32>
    %97 = arith.mulf %19, %61 : vector<72x128xf32>
    %98 = arith.mulf %25, %66 : vector<72x128xf32>
    %99 = arith.subf %97, %98 : vector<72x128xf32>
    %100 = arith.mulf %21, %66 : vector<72x128xf32>
    %101 = arith.mulf %27, %71 : vector<72x128xf32>
    %102 = arith.subf %100, %101 : vector<72x128xf32>
    %103 = arith.mulf %23, %71 : vector<72x128xf32>
    %104 = arith.mulf %29, %76 : vector<72x128xf32>
    %105 = arith.subf %103, %104 : vector<72x128xf32>
    %106 = arith.mulf %25, %76 : vector<72x128xf32>
    %107 = arith.mulf %31, %81 : vector<72x128xf32>
    %108 = arith.subf %106, %107 : vector<72x128xf32>
    %109 = arith.mulf %9, %84 : vector<72x128xf32>
    %110 = arith.mulf %17, %87 : vector<72x128xf32>
    %111 = arith.subf %109, %110 : vector<72x128xf32>
    %112 = arith.mulf %11, %87 : vector<72x128xf32>
    %113 = arith.mulf %19, %90 : vector<72x128xf32>
    %114 = arith.subf %112, %113 : vector<72x128xf32>
    %115 = arith.mulf %13, %90 : vector<72x128xf32>
    %116 = arith.mulf %21, %93 : vector<72x128xf32>
    %117 = arith.subf %115, %116 : vector<72x128xf32>
    %118 = arith.mulf %15, %93 : vector<72x128xf32>
    %119 = arith.mulf %23, %96 : vector<72x128xf32>
    %120 = arith.subf %118, %119 : vector<72x128xf32>
    %121 = arith.mulf %17, %96 : vector<72x128xf32>
    %122 = arith.mulf %25, %99 : vector<72x128xf32>
    %123 = arith.subf %121, %122 : vector<72x128xf32>
    %124 = arith.mulf %19, %99 : vector<72x128xf32>
    %125 = arith.mulf %27, %102 : vector<72x128xf32>
    %126 = arith.subf %124, %125 : vector<72x128xf32>
    %127 = arith.mulf %21, %102 : vector<72x128xf32>
    %128 = arith.mulf %29, %105 : vector<72x128xf32>
    %129 = arith.subf %127, %128 : vector<72x128xf32>
    %130 = arith.mulf %23, %105 : vector<72x128xf32>
    %131 = arith.mulf %31, %108 : vector<72x128xf32>
    %132 = arith.subf %130, %131 : vector<72x128xf32>
    %c72 = arith.constant 72 : index
    %c0_35 = arith.constant 0 : index
    %133 = vector.load %arg4[%c72, %c0_35] : memref<648x128xf32, #tpu.memory_space<vmem>>, vector<72x128xf32>
    tpu.vector_store %arg4[%c72, %c0_35], %111 {strides = array<i32>} : memref<648x128xf32, #tpu.memory_space<vmem>>, vector<72x128xf32>,
    %c144 = arith.constant 144 : index
    %c0_36 = arith.constant 0 : index
    %134 = vector.load %arg4[%c144, %c0_36] : memref<648x128xf32, #tpu.memory_space<vmem>>, vector<72x128xf32>
    tpu.vector_store %arg4[%c144, %c0_36], %114 {strides = array<i32>} : memref<648x128xf32, #tpu.memory_space<vmem>>, vector<72x128xf32>,
    %c216 = arith.constant 216 : index
    %c0_37 = arith.constant 0 : index
    %135 = vector.load %arg4[%c216, %c0_37] : memref<648x128xf32, #tpu.memory_space<vmem>>, vector<72x128xf32>
    tpu.vector_store %arg4[%c216, %c0_37], %117 {strides = array<i32>} : memref<648x128xf32, #tpu.memory_space<vmem>>, vector<72x128xf32>,
    %c288 = arith.constant 288 : index
    %c0_38 = arith.constant 0 : index
    %136 = vector.load %arg4[%c288, %c0_38] : memref<648x128xf32, #tpu.memory_space<vmem>>, vector<72x128xf32>
    tpu.vector_store %arg4[%c288, %c0_38], %120 {strides = array<i32>} : memref<648x128xf32, #tpu.memory_space<vmem>>, vector<72x128xf32>,
    %c360 = arith.constant 360 : index
    %c0_39 = arith.constant 0 : index
    %137 = vector.load %arg4[%c360, %c0_39] : memref<648x128xf32, #tpu.memory_space<vmem>>, vector<72x128xf32>
    tpu.vector_store %arg4[%c360, %c0_39], %123 {strides = array<i32>} : memref<648x128xf32, #tpu.memory_space<vmem>>, vector<72x128xf32>,
    %c432 = arith.constant 432 : index
    %c0_40 = arith.constant 0 : index
    %138 = vector.load %arg4[%c432, %c0_40] : memref<648x128xf32, #tpu.memory_space<vmem>>, vector<72x128xf32>
    tpu.vector_store %arg4[%c432, %c0_40], %126 {strides = array<i32>} : memref<648x128xf32, #tpu.memory_space<vmem>>, vector<72x128xf32>,
    %c504 = arith.constant 504 : index
    %c0_41 = arith.constant 0 : index
    %139 = vector.load %arg4[%c504, %c0_41] : memref<648x128xf32, #tpu.memory_space<vmem>>, vector<72x128xf32>
    tpu.vector_store %arg4[%c504, %c0_41], %129 {strides = array<i32>} : memref<648x128xf32, #tpu.memory_space<vmem>>, vector<72x128xf32>,
    %c576 = arith.constant 576 : index
    %c0_42 = arith.constant 0 : index
    %140 = vector.load %arg4[%c576, %c0_42] : memref<648x128xf32, #tpu.memory_space<vmem>>, vector<72x128xf32>
    tpu.vector_store %arg4[%c576, %c0_42], %132 {strides = array<i32>} : memref<648x128xf32, #tpu.memory_space<vmem>>, vector<72x128xf32>,
    %c0_43 = arith.constant 0 : index
    %c0_44 = arith.constant 0 : index
    %141 = vector.load %arg2[%c0_43, %c0_44] : memref<16x648xf32, #tpu.memory_space<vmem>>, vector<16x648xf32>
    %c0_45 = arith.constant 0 : index
    %c0_46 = arith.constant 0 : index
    %142 = vector.load %arg4[%c0_45, %c0_46] : memref<648x128xf32, #tpu.memory_space<vmem>>, vector<648x128xf32>
    %cst_47 = arith.constant dense<0.000000e+00> : vector<16x128xf32>
    %143 = tpu.matmul %141, %142, %cst_47 {dimension_numbers = #tpu.dot_dimension_numbers<[1], [0], [0], [1], [0, 0, 1, 1], [], []>} : vector<16x648xf32>, vector<648x128xf32>, vector<16x128xf32> -> vector<16x128xf32>
    %c0_48 = arith.constant 0 : index
    %c0_49 = arith.constant 0 : index
    %144 = vector.load %arg3[%c0_48, %c0_49] : memref<16x128xf32, #tpu.memory_space<vmem>>, vector<16x128xf32>
    tpu.vector_store %arg3[%c0_48, %c0_49], %143 {strides = array<i32>} : memref<16x128xf32, #tpu.memory_space<vmem>>, vector<16x128xf32>,
    return
  }
  func.func @transform_0(%arg0: i32) -> (i32, i32) {
    %c0_i32 = arith.constant 0 : i32
    %c0_i32_0 = arith.constant 0 : i32
    return %c0_i32, %arg0 : i32, i32
  }
  func.func @transform_1(%arg0: i32) -> (i32, i32) {
    %c0_i32 = arith.constant 0 : i32
    %c0_i32_0 = arith.constant 0 : i32
    %c0_i32_1 = arith.constant 0 : i32
    return %c0_i32, %c0_i32_0 : i32, i32
  }
  func.func @transform_2(%arg0: i32) -> (i32, i32) {
    %c0_i32 = arith.constant 0 : i32
    %c0_i32_0 = arith.constant 0 : i32
    return %c0_i32, %arg0 : i32, i32
  }
}

</mosaic_0001>

<llo_original>
// kernel: tpu_custom_call.1
$region0: #{tpu_custom_call.1}
  #allocation0 [shape = 'u32[]', space=smem, size = 0x4, offset = 0x4, fixed_abs, tag = 'smem constant byte address 0x4 - core index']
  #allocation1 [shape = 'u32[144,128]{1,0:T(1,128)}', space=vmem, size = 0x12000, scoped, tag = 'internal scratch']
  #allocation2 [shape = 'f32[648,128]{1,0:T(8,128)}', space=vmem, size = 0x51000, scoped, tag = 'scratch operand']
  %s0 = inlined_call_operand.hbm [shape: f32[72,256], index: 0, kind: input, shape index: {}]
  %s1 = inlined_call_operand.hbm [shape: f32[16,648], index: 1, kind: input, shape index: {}]
  %s2 = inlined_call_operand.hbm [shape: f32[16,256], index: 2, kind: output, shape index: {}]
  %s3 = sld [smem:[#allocation0]]
  $region49: #{tpu_custom_call.1} parent=0
    _
  %s5 = ssub.s32 1, %s3
  %s6 = scalar_select 0, %s5, %s3
  $region1: #{tpu_custom_call.1} parent=0
    #allocation3 [shape = 'u8[73728]{0}', space=vmem, size = 0x12000, scoped, tag = 'input window, operand 0']
    #allocation4 [shape = 's32[2]{0}', space=sflag, size = 0x8, scoped, tag = 'scoped memory for tpu_custom_call.1']
    #allocation5 [shape = 's32[2]{0}', space=sflag, size = 0x8, scoped, tag = 'scoped memory for tpu_custom_call.1']
    #allocation6 [shape = 'u8[49152]{0}', space=vmem, size = 0xc000, scoped, tag = 'input window, operand 1, single buffered']
    #allocation7 [shape = 's32[1]{0}', space=sflag, size = 0x4, scoped, tag = 'scoped memory for tpu_custom_call.1']
    #allocation8 [shape = 'u8[16384]{0}', space=vmem, size = 0x4000, scoped, tag = 'output window, operand 0']
    %7 = vsyncpa [#allocation4], 0
    %s8 = scalar_lea.sflag [#allocation4], 1
    %9 = vsyncpa %s8, 0
    %10 = vsyncpa [#allocation7], 0
    %11 = vsyncpa [#allocation5], 0
    %s12 = scalar_lea.sflag [#allocation5], 1
    %13 = vsyncpa %s12, 0
    loop: start=0, step=1, limit=4
    $region2: #{tpu_custom_call.1} parent=1 // loop_pre_header
      _
    $region3: #{tpu_custom_call.1} parent=1 // loop_header
      %s15 = sphi 0, %s19
      %p16 = scmp.ge.s32.totalorder %s15, 4
      %s25 = sphi 0, %s27
      %s28 = sphi 0, %s25
      %s29 = sphi 0, %s28
      %s45 = sphi 0, %s29
      %s49 = sphi 0, %s49
      %s51 = sphi 0, %s49
      %s52 = sphi 0, %s51
      %s66 = sphi 0, %s52
      %s72 = sphi 0, %s74
      %s75 = sphi 0, %s72
      %s76 = sphi 0, %s75
      %s92 = sphi 0, %s76
    $region4: #{tpu_custom_call.1} parent=1 // loop_header_branch
      %18 = sbr.rel (%p16) target = $region8
    $region5: #{tpu_custom_call.1} parent=1 // loop_body
      %s20 = ssub.s32 %s15, 1
      %s21 = ssub.s32 %s15, 2
      %s22 = sadd.s32 %s15, 1
      %s23 = ssub.s32 %s15, %s22
      %p24 = scmp.eq.s32.totalorder %s23, 0
      %s26 = sadd.s32 %s25, 1
      %s27 = scalar_select %p24, %s25, %s26
      %p30 = pneg %p24
      %p31 = scmp.eq.s32.totalorder %s15, 1
      %p32 = por %p30, %p31
      %p33 = scmp.ne.s32.totalorder %s25, %s28
      %p34 = scmp.eq.s32.totalorder %s15, 0
      %p35 = por %p33, %p34
      %p36 = scmp.ne.s32.totalorder %s25, %s28
      %p37 = scmp.eq.s32.totalorder %s20, 1
      %p38 = por %p36, %p37
      %p39 = scmp.ne.s32.totalorder %s28, %s29
      %p40 = scmp.eq.s32.totalorder %s20, 0
      %p41 = por %p39, %p40
      %p42 = scmp.ne.s32.totalorder %s28, %s29
      %p43 = scmp.eq.s32.totalorder %s21, 1
      %p44 = por %p42, %p43
      %p46 = scmp.ne.s32.totalorder %s29, %s45
      %p47 = scmp.eq.s32.totalorder %s21, 0
      %p48 = por %p46, %p47
      %s50 = sadd.s32 %s49, 1
      %p53 = scmp.eq.s32.totalorder %s15, 1
      %p54 = scmp.ne.s32.totalorder %s49, %s51
      %p55 = scmp.eq.s32.totalorder %s15, 0
      %p56 = por %p54, %p55
      %p57 = scmp.ne.s32.totalorder %s49, %s51
      %p58 = scmp.eq.s32.totalorder %s20, 1
      %p59 = por %p57, %p58
      %p60 = scmp.ne.s32.totalorder %s51, %s52
      %p61 = scmp.eq.s32.totalorder %s20, 0
      %p62 = por %p60, %p61
      %p63 = scmp.ne.s32.totalorder %s51, %s52
      %p64 = scmp.eq.s32.totalorder %s21, 1
      %p65 = por %p63, %p64
      %p67 = scmp.ne.s32.totalorder %s52, %s66
      %p68 = scmp.eq.s32.totalorder %s21, 0
      %p69 = por %p67, %p68
      %s70 = ssub.s32 %s15, %s22
      %p71 = scmp.eq.s32.totalorder %s70, 0
      %s73 = sadd.s32 %s72, 1
      %s74 = scalar_select %p71, %s72, %s73
      %p77 = pneg %p71
      %p78 = scmp.eq.s32.totalorder %s15, 1
      %p79 = por %p77, %p78
      %p80 = scmp.ne.s32.totalorder %s72, %s75
      %p81 = scmp.eq.s32.totalorder %s15, 0
      %p82 = por %p80, %p81
      %p83 = scmp.ne.s32.totalorder %s72, %s75
      %p84 = scmp.eq.s32.totalorder %s20, 1
      %p85 = por %p83, %p84
      %p86 = scmp.ne.s32.totalorder %s75, %s76
      %p87 = scmp.eq.s32.totalorder %s20, 0
      %p88 = por %p86, %p87
      %p89 = scmp.ne.s32.totalorder %s75, %s76
      %p90 = scmp.eq.s32.totalorder %s21, 1
      %p91 = por %p89, %p90
      %p93 = scmp.ne.s32.totalorder %s76, %s92
      %p94 = scmp.eq.s32.totalorder %s21, 0
      %p95 = por %p93, %p94
      %p96 = scmp.le.s32.totalorder 1, %s15
      %p97 = scmp.lt.s32.totalorder %s15, 3
      %p98 = pnand %p96, %p97
      %p99 = pneg %p98
      // Predicated region
      $region9: #{tpu_custom_call.1} parent=5 // pred_check
        _
      $region10: #{tpu_custom_call.1} parent=5 // pred_check_branch
        %101 = sbr.rel (%p98) target = $region12
      $region11: #{tpu_custom_call.1} parent=5 // pred_region
        %s102 = ssub.s32 %s15, 1
        // Predicated region
        $region13: #{tpu_custom_call.1} parent=11 // pred_check
          %p103 = pneg %p62
        $region14: #{tpu_custom_call.1} parent=11 // pred_check_branch
          %105 = sbr.rel (%p103) target = $region16
        $region15: #{tpu_custom_call.1} parent=11 // pred_region
          %s107 = ssub.s32 1536, 1536
          %108 = vsyncadd [#allocation7], %s107
          %s109 = sshll.u32 [#allocation6], 4
          %s110 = int_to_ptr.vmem [resolvable:$true] %s109
          %115 = dma.hbm_to_vmem [thread:$0]  %s1, 1536, %s110, [#allocation7], 768, 768, 48
        $region16: #{tpu_custom_call.1} parent=11 // pred_fallthru
          _
      $region12: #{tpu_custom_call.1} parent=5 // pred_fallthru
        _
      %p116 = scmp.lt.s32.totalorder %s15, 2
      // Predicated region
      $region17: #{tpu_custom_call.1} parent=5 // pred_check
        %p117 = pneg %p116
      $region18: #{tpu_custom_call.1} parent=5 // pred_check_branch
        %119 = sbr.rel (%p117) target = $region20
      $region19: #{tpu_custom_call.1} parent=5 // pred_region
        // Predicated region
        $region21: #{tpu_custom_call.1} parent=19 // pred_check
          %p120 = pneg %p35
        $region22: #{tpu_custom_call.1} parent=19 // pred_check_branch
          %122 = sbr.rel (%p120) target = $region24
        $region23: #{tpu_custom_call.1} parent=19 // pred_region
          %s123 = sand.u32 %s25, 1
          %s124 = scalar_lea.sflag [#allocation4], %s123
          %s125 = sand.u32 %s25, 1
          %s126 = smul.addr %s125, 72
          %s127 = scalar_lea.vmem [#allocation3], %s126
          %s129 = ssub.s32 1152, 1152
          %130 = vsyncadd %s124, %s129
          %s131 = smul.addr %s15, 128
          %s132 = scalar_lea.hbm %s0, %s131
          %s133 = sshll.u32 %s127, 4
          %s134 = int_to_ptr.vmem [resolvable:$true] %s133
          %139 = dma.hbm_to_vmem [thread:$0]  %s132, 1152, %s134, %s124, 256, 128, 8
        $region24: #{tpu_custom_call.1} parent=19 // pred_fallthru
          _
      $region20: #{tpu_custom_call.1} parent=5 // pred_fallthru
        _
      %p140 = scmp.le.s32.totalorder 1, %s15
      %p141 = scmp.lt.s32.totalorder %s15, 3
      %p142 = pnand %p140, %p141
      %p143 = pneg %p142
      // Predicated region
      $region25: #{tpu_custom_call.1} parent=5 // pred_check
        _
      $region26: #{tpu_custom_call.1} parent=5 // pred_check_branch
        %145 = sbr.rel (%p142) target = $region28
      $region27: #{tpu_custom_call.1} parent=5 // pred_region
        %s146 = ssub.s32 %s15, 1
        %s147 = sand.u32 %s28, 1
        %s148 = scalar_lea.sflag [#allocation4], %s147
        %s149 = sand.u32 %s28, 1
        %s150 = smul.addr %s149, 72
        %s151 = scalar_lea.vmem [#allocation3], %s150
        // Predicated region
        $region29: #{tpu_custom_call.1} parent=27 // pred_check
          %p152 = pneg %p41
        $region30: #{tpu_custom_call.1} parent=27 // pred_check_branch
          %154 = sbr.rel (%p152) target = $region32
        $region31: #{tpu_custom_call.1} parent=27 // pred_region
          %155 = dma.done %s148, 1152
        $region32: #{tpu_custom_call.1} parent=27 // pred_fallthru
          _
        // Predicated region
        $region33: #{tpu_custom_call.1} parent=27 // pred_check
          %p156 = pneg %p62
        $region34: #{tpu_custom_call.1} parent=27 // pred_check_branch
          %158 = sbr.rel (%p156) target = $region36
        $region35: #{tpu_custom_call.1} parent=27 // pred_region
          %159 = dma.done [#allocation7], 1536
        $region36: #{tpu_custom_call.1} parent=27 // pred_fallthru
          _
        %s160 = sand.u32 %s28, 1
        %s161 = scalar_lea.sflag [#allocation4], %s160
        %s162 = sand.u32 %s28, 1
        %s163 = smul.addr %s162, 72
        %s164 = scalar_lea.vmem [#allocation3], %s163
        %p165 = pneg %p41
        %p166 = pneg %p38
        %p167 = pneg %p62
        %p168 = pneg %p59
        %p169 = pneg %p88
        %p170 = pneg %p85
        %s171 = sand.u32 %s75, 1
        %s172 = scalar_lea.sflag [#allocation5], %s171
        %s173 = sand.u32 %s75, 1
        %s174 = smul.addr %s173, 16
        %s175 = scalar_lea.vmem [#allocation8], %s174
        %v176 = vld [vmem:[%s151] sm:$0xff]
        %v177 = vld [vmem:[%s151 + $0x8] sm:$0xff]
        %v178 = vld [vmem:[%s151 + $0x10] sm:$0xff]
        %v179 = vld [vmem:[%s151 + $0x18] sm:$0xff]
        %v180 = vld [vmem:[%s151 + $0x20] sm:$0xff]
        %v181 = vld [vmem:[%s151 + $0x28] sm:$0xff]
        %v182 = vld [vmem:[%s151 + $0x30] sm:$0xff]
        %v183 = vld [vmem:[%s151 + $0x38] sm:$0xff]
        %v184 = vld [vmem:[%s151 + $0x40] sm:$0xff]
        %v185 = vxor.u32 %v176, 2147483648
        %v186 = vxor.u32 %v177, 2147483648
        %v187 = vxor.u32 %v178, 2147483648
        %v188 = vxor.u32 %v179, 2147483648
        %v189 = vxor.u32 %v180, 2147483648
        %v190 = vxor.u32 %v181, 2147483648
        %v191 = vxor.u32 %v182, 2147483648
        %v192 = vxor.u32 %v183, 2147483648
        %v193 = vxor.u32 %v184, 2147483648
        %v194 = vmul.f32 %v185, 1.442695
        %v195 = vpow.pop %v194
        %v196 = vmul.f32 %v186, 1.442695
        %v197 = vpow.pop %v196
        %v198 = vmul.f32 %v187, 1.442695
        %v199 = vpow.pop %v198
        %v200 = vmul.f32 %v188, 1.442695
        %v201 = vpow.pop %v200
        %v202 = vmul.f32 %v189, 1.442695
        %v203 = vpow.pop %v202
        %v204 = vmul.f32 %v190, 1.442695
        %v205 = vpow.pop %v204
        %v206 = vmul.f32 %v191, 1.442695
        %v207 = vpow.pop %v206
        %v208 = vmul.f32 %v192, 1.442695
        %v209 = vpow.pop %v208
        %v210 = vmul.f32 %v193, 1.442695
        %v211 = vpow.pop %v210
        %v212 = vadd.f32 %v195, 1.0
        %v213 = vadd.f32 %v197, 1.0
        %v214 = vadd.f32 %v199, 1.0
        %v215 = vadd.f32 %v201, 1.0
        %v216 = vadd.f32 %v203, 1.0
        %v217 = vadd.f32 %v205, 1.0
        %v218 = vadd.f32 %v207, 1.0
        %v219 = vadd.f32 %v209, 1.0
        %v220 = vadd.f32 %v211, 1.0
        %v221 = vrcp.pop %v212
        %v222 = vmul.f32 1.0, %v221
        %v223 = vrcp.pop %v213
        %v224 = vmul.f32 1.0, %v223
        %v225 = vrcp.pop %v214
        %v226 = vmul.f32 1.0, %v225
        %v227 = vrcp.pop %v215
        %v228 = vmul.f32 1.0, %v227
        %v229 = vrcp.pop %v216
        %v230 = vmul.f32 1.0, %v229
        %v231 = vrcp.pop %v217
        %v232 = vmul.f32 1.0, %v231
        %v233 = vrcp.pop %v218
        %v234 = vmul.f32 1.0, %v233
        %v235 = vrcp.pop %v219
        %v236 = vmul.f32 1.0, %v235
        %v237 = vrcp.pop %v220
        %v238 = vmul.f32 1.0, %v237
        %v239 = vmul.f32 %v176, %v222
        %v240 = vmul.f32 %v177, %v224
        %v241 = vmul.f32 %v178, %v226
        %v242 = vmul.f32 %v179, %v228
        %v243 = vmul.f32 %v180, %v230
        %v244 = vmul.f32 %v181, %v232
        %v245 = vmul.f32 %v182, %v234
        %v246 = vmul.f32 %v183, %v236
        %v247 = vmul.f32 %v184, %v238
        %248 = vst [vmem:[#allocation2] sm:$0xff] %v239
        %249 = vst [vmem:[#allocation2 + $0x8] sm:$0xff] %v240
        %250 = vst [vmem:[#allocation2 + $0x10] sm:$0xff] %v241
        %251 = vst [vmem:[#allocation2 + $0x18] sm:$0xff] %v242
        %252 = vst [vmem:[#allocation2 + $0x20] sm:$0xff] %v243
        %253 = vst [vmem:[#allocation2 + $0x28] sm:$0xff] %v244
        %254 = vst [vmem:[#allocation2 + $0x30] sm:$0xff] %v245
        %255 = vst [vmem:[#allocation2 + $0x38] sm:$0xff] %v246
        %256 = vst [vmem:[#allocation2 + $0x40] sm:$0xff] %v247
        %v257 = vsub.f32 %v176, -2.2
        %v258 = vsub.f32 %v177, -2.2
        %v259 = vsub.f32 %v178, -2.2
        %v260 = vsub.f32 %v179, -2.2
        %v261 = vsub.f32 %v180, -2.2
        %v262 = vsub.f32 %v181, -2.2
        %v263 = vsub.f32 %v182, -2.2
        %v264 = vsub.f32 %v183, -2.2
        %v265 = vsub.f32 %v184, -2.2
        %v266 = vsub.f32 %v176, -1.8
        %v267 = vsub.f32 %v177, -1.8
        %v268 = vsub.f32 %v178, -1.8
        %v269 = vsub.f32 %v179, -1.8
        %v270 = vsub.f32 %v180, -1.8
        %v271 = vsub.f32 %v181, -1.8
        %v272 = vsub.f32 %v182, -1.8
        %v273 = vsub.f32 %v183, -1.8
        %v274 = vsub.f32 %v184, -1.8
        %v275 = vsub.f32 %v176, -1.4
        %v276 = vsub.f32 %v177, -1.4
        %v277 = vsub.f32 %v178, -1.4
        %v278 = vsub.f32 %v179, -1.4
        %v279 = vsub.f32 %v180, -1.4
        %v280 = vsub.f32 %v181, -1.4
        %v281 = vsub.f32 %v182, -1.4
        %v282 = vsub.f32 %v183, -1.4
        %v283 = vsub.f32 %v184, -1.4
        %v284 = vsub.f32 %v176, -1.0
        %v285 = vsub.f32 %v177, -1.0
        %v286 = vsub.f32 %v178, -1.0
        %v287 = vsub.f32 %v179, -1.0
        %v288 = vsub.f32 %v180, -1.0
        %v289 = vsub.f32 %v181, -1.0
        %v290 = vsub.f32 %v182, -1.0
        %v291 = vsub.f32 %v183, -1.0
        %v292 = vsub.f32 %v184, -1.0
        %v293 = vsub.f32 %v176, -0.6
        %v294 = vsub.f32 %v177, -0.6
        %v295 = vsub.f32 %v178, -0.6
        %v296 = vsub.f32 %v179, -0.6
        %v297 = vsub.f32 %v180, -0.6
        %v298 = vsub.f32 %v181, -0.6
        %v299 = vsub.f32 %v182, -0.6
        %v300 = vsub.f32 %v183, -0.6
        %v301 = vsub.f32 %v184, -0.6
        %v302 = vsub.f32 %v176, -0.2
        %v303 = vsub.f32 %v177, -0.2
        %v304 = vsub.f32 %v178, -0.2
        %v305 = vsub.f32 %v179, -0.2
        %v306 = vsub.f32 %v180, -0.2
        %v307 = vsub.f32 %v181, -0.2
        %v308 = vsub.f32 %v182, -0.2
        %v309 = vsub.f32 %v183, -0.2
        %v310 = vsub.f32 %v184, -0.2
        %v311 = vsub.f32 %v176, 0.2
        %v312 = vsub.f32 %v177, 0.2
        %v313 = vsub.f32 %v178, 0.2
        %v314 = vsub.f32 %v179, 0.2
        %v315 = vsub.f32 %v180, 0.2
        %v316 = vsub.f32 %v181, 0.2
        %v317 = vsub.f32 %v182, 0.2
        %v318 = vsub.f32 %v183, 0.2
        %v319 = vsub.f32 %v184, 0.2
        %v320 = vsub.f32 %v176, 0.6
        %v321 = vsub.f32 %v177, 0.6
        %v322 = vsub.f32 %v178, 0.6
        %v323 = vsub.f32 %v179, 0.6
        %v324 = vsub.f32 %v180, 0.6
        %v325 = vsub.f32 %v181, 0.6
        %v326 = vsub.f32 %v182, 0.6
        %v327 = vsub.f32 %v183, 0.6
        %v328 = vsub.f32 %v184, 0.6
        %v329 = vsub.f32 %v176, 1.0
        %v330 = vsub.f32 %v177, 1.0
        %v331 = vsub.f32 %v178, 1.0
        %v332 = vsub.f32 %v179, 1.0
        %v333 = vsub.f32 %v180, 1.0
        %v334 = vsub.f32 %v181, 1.0
        %v335 = vsub.f32 %v182, 1.0
        %v336 = vsub.f32 %v183, 1.0
        %v337 = vsub.f32 %v184, 1.0
        %v338 = vsub.f32 %v176, 1.4
        %v339 = vsub.f32 %v177, 1.4
        %v340 = vsub.f32 %v178, 1.4
        %v341 = vsub.f32 %v179, 1.4
        %v342 = vsub.f32 %v180, 1.4
        %v343 = vsub.f32 %v181, 1.4
        %v344 = vsub.f32 %v182, 1.4
        %v345 = vsub.f32 %v183, 1.4
        %v346 = vsub.f32 %v184, 1.4
        %v347 = vsub.f32 %v176, 1.8
        %v348 = vsub.f32 %v177, 1.8
        %v349 = vsub.f32 %v178, 1.8
        %v350 = vsub.f32 %v179, 1.8
        %v351 = vsub.f32 %v180, 1.8
        %v352 = vsub.f32 %v181, 1.8
        %v353 = vsub.f32 %v182, 1.8
        %v354 = vsub.f32 %v183, 1.8
        %v355 = vsub.f32 %v184, 1.8
        %v356 = vsub.f32 %v176, 2.2
        %v357 = vsub.f32 %v177, 2.2
        %v358 = vsub.f32 %v178, 2.2
        %v359 = vsub.f32 %v179, 2.2
        %v360 = vsub.f32 %v180, 2.2
        %v361 = vsub.f32 %v181, 2.2
        %v362 = vsub.f32 %v182, 2.2
        %v363 = vsub.f32 %v183, 2.2
        %v364 = vsub.f32 %v184, 2.2
        %v365 = vand.u32 2147483647, %v266
        %v366 = vand.u32 2147483647, %v267
        %v367 = vand.u32 2147483647, %v268
        %v368 = vand.u32 2147483647, %v269
        %v369 = vand.u32 2147483647, %v270
        %v370 = vand.u32 2147483647, %v271
        %v371 = vand.u32 2147483647, %v272
        %v372 = vand.u32 2147483647, %v273
        %v373 = vand.u32 2147483647, %v274
        %v374 = vsub.f32 0.4, %v365
        %v375 = vsub.f32 0.4, %v366
        %v376 = vsub.f32 0.4, %v367
        %v377 = vsub.f32 0.4, %v368
        %v378 = vsub.f32 0.4, %v369
        %v379 = vsub.f32 0.4, %v370
        %v380 = vsub.f32 0.4, %v371
        %v381 = vsub.f32 0.4, %v372
        %v382 = vsub.f32 0.4, %v373
        %v383 = vmax.f32 %v374, 0.0
        %v384 = vmax.f32 %v375, 0.0
        %v385 = vmax.f32 %v376, 0.0
        %v386 = vmax.f32 %v377, 0.0
        %v387 = vmax.f32 %v378, 0.0
        %v388 = vmax.f32 %v379, 0.0
        %v389 = vmax.f32 %v380, 0.0
        %v390 = vmax.f32 %v381, 0.0
        %v391 = vmax.f32 %v382, 0.0
        %v392 = vand.u32 2147483647, %v275
        %v393 = vand.u32 2147483647, %v276
        %v394 = vand.u32 2147483647, %v277
        %v395 = vand.u32 2147483647, %v278
        %v396 = vand.u32 2147483647, %v279
        %v397 = vand.u32 2147483647, %v280
        %v398 = vand.u32 2147483647, %v281
        %v399 = vand.u32 2147483647, %v282
        %v400 = vand.u32 2147483647, %v283
        %v401 = vsub.f32 0.4, %v392
        %v402 = vsub.f32 0.4, %v393
        %v403 = vsub.f32 0.4, %v394
        %v404 = vsub.f32 0.4, %v395
        %v405 = vsub.f32 0.4, %v396
        %v406 = vsub.f32 0.4, %v397
        %v407 = vsub.f32 0.4, %v398
        %v408 = vsub.f32 0.4, %v399
        %v409 = vsub.f32 0.4, %v400
        %v410 = vmax.f32 %v401, 0.0
        %v411 = vmax.f32 %v402, 0.0
        %v412 = vmax.f32 %v403, 0.0
        %v413 = vmax.f32 %v404, 0.0
        %v414 = vmax.f32 %v405, 0.0
        %v415 = vmax.f32 %v406, 0.0
        %v416 = vmax.f32 %v407, 0.0
        %v417 = vmax.f32 %v408, 0.0
        %v418 = vmax.f32 %v409, 0.0
        %v419 = vand.u32 2147483647, %v284
        %v420 = vand.u32 2147483647, %v285
        %v421 = vand.u32 2147483647, %v286
        %v422 = vand.u32 2147483647, %v287
        %v423 = vand.u32 2147483647, %v288
        %v424 = vand.u32 2147483647, %v289
        %v425 = vand.u32 2147483647, %v290
        %v426 = vand.u32 2147483647, %v291
        %v427 = vand.u32 2147483647, %v292
        %v428 = vsub.f32 0.4, %v419
        %v429 = vsub.f32 0.4, %v420
        %v430 = vsub.f32 0.4, %v421
        %v431 = vsub.f32 0.4, %v422
        %v432 = vsub.f32 0.4, %v423
        %v433 = vsub.f32 0.4, %v424
        %v434 = vsub.f32 0.4, %v425
        %v435 = vsub.f32 0.4, %v426
        %v436 = vsub.f32 0.4, %v427
        %v437 = vmax.f32 %v428, 0.0
        %v438 = vmax.f32 %v429, 0.0
        %v439 = vmax.f32 %v430, 0.0
        %v440 = vmax.f32 %v431, 0.0
        %v441 = vmax.f32 %v432, 0.0
        %v442 = vmax.f32 %v433, 0.0
        %v443 = vmax.f32 %v434, 0.0
        %v444 = vmax.f32 %v435, 0.0
        %v445 = vmax.f32 %v436, 0.0
        %v446 = vand.u32 2147483647, %v293
        %v447 = vand.u32 2147483647, %v294
        %v448 = vand.u32 2147483647, %v295
        %v449 = vand.u32 2147483647, %v296
        %v450 = vand.u32 2147483647, %v297
        %v451 = vand.u32 2147483647, %v298
        %v452 = vand.u32 2147483647, %v299
        %v453 = vand.u32 2147483647, %v300
        %v454 = vand.u32 2147483647, %v301
        %v455 = vsub.f32 0.4, %v446
        %v456 = vsub.f32 0.4, %v447
        %v457 = vsub.f32 0.4, %v448
        %v458 = vsub.f32 0.4, %v449
        %v459 = vsub.f32 0.4, %v450
        %v460 = vsub.f32 0.4, %v451
        %v461 = vsub.f32 0.4, %v452
        %v462 = vsub.f32 0.4, %v453
        %v463 = vsub.f32 0.4, %v454
        %v464 = vmax.f32 %v455, 0.0
        %v465 = vmax.f32 %v456, 0.0
        %v466 = vmax.f32 %v457, 0.0
        %v467 = vmax.f32 %v458, 0.0
        %v468 = vmax.f32 %v459, 0.0
        %v469 = vmax.f32 %v460, 0.0
        %v470 = vmax.f32 %v461, 0.0
        %v471 = vmax.f32 %v462, 0.0
        %v472 = vmax.f32 %v463, 0.0
        %v473 = vand.u32 2147483647, %v302
        %v474 = vand.u32 2147483647, %v303
        %v475 = vand.u32 2147483647, %v304
        %v476 = vand.u32 2147483647, %v305
        %v477 = vand.u32 2147483647, %v306
        %v478 = vand.u32 2147483647, %v307
        %v479 = vand.u32 2147483647, %v308
        %v480 = vand.u32 2147483647, %v309
        %v481 = vand.u32 2147483647, %v310
        %v482 = vsub.f32 0.4, %v473
        %v483 = vsub.f32 0.4, %v474
        %v484 = vsub.f32 0.4, %v475
        %v485 = vsub.f32 0.4, %v476
        %v486 = vsub.f32 0.4, %v477
        %v487 = vsub.f32 0.4, %v478
        %v488 = vsub.f32 0.4, %v479
        %v489 = vsub.f32 0.4, %v480
        %v490 = vsub.f32 0.4, %v481
        %v491 = vmax.f32 %v482, 0.0
        %v492 = vmax.f32 %v483, 0.0
        %v493 = vmax.f32 %v484, 0.0
        %v494 = vmax.f32 %v485, 0.0
        %v495 = vmax.f32 %v486, 0.0
        %v496 = vmax.f32 %v487, 0.0
        %v497 = vmax.f32 %v488, 0.0
        %v498 = vmax.f32 %v489, 0.0
        %v499 = vmax.f32 %v490, 0.0
        %v500 = vand.u32 2147483647, %v311
        %v501 = vand.u32 2147483647, %v312
        %v502 = vand.u32 2147483647, %v313
        %v503 = vand.u32 2147483647, %v314
        %v504 = vand.u32 2147483647, %v315
        %v505 = vand.u32 2147483647, %v316
        %v506 = vand.u32 2147483647, %v317
        %v507 = vand.u32 2147483647, %v318
        %v508 = vand.u32 2147483647, %v319
        %v509 = vsub.f32 0.4, %v500
        %v510 = vsub.f32 0.4, %v501
        %v511 = vsub.f32 0.4, %v502
        %v512 = vsub.f32 0.4, %v503
        %v513 = vsub.f32 0.4, %v504
        %v514 = vsub.f32 0.4, %v505
        %v515 = vsub.f32 0.4, %v506
        %v516 = vsub.f32 0.4, %v507
        %v517 = vsub.f32 0.4, %v508
        %v518 = vmax.f32 %v509, 0.0
        %v519 = vmax.f32 %v510, 0.0
        %v520 = vmax.f32 %v511, 0.0
        %v521 = vmax.f32 %v512, 0.0
        %v522 = vmax.f32 %v513, 0.0
        %v523 = vmax.f32 %v514, 0.0
        %v524 = vmax.f32 %v515, 0.0
        %v525 = vmax.f32 %v516, 0.0
        %v526 = vmax.f32 %v517, 0.0
        %v527 = vand.u32 2147483647, %v320
        %v528 = vand.u32 2147483647, %v321
        %v529 = vand.u32 2147483647, %v322
        %v530 = vand.u32 2147483647, %v323
        %v531 = vand.u32 2147483647, %v324
        %v532 = vand.u32 2147483647, %v325
        %v533 = vand.u32 2147483647, %v326
        %v534 = vand.u32 2147483647, %v327
        %v535 = vand.u32 2147483647, %v328
        %v536 = vsub.f32 0.4, %v527
        %v537 = vsub.f32 0.4, %v528
        %v538 = vsub.f32 0.4, %v529
        %v539 = vsub.f32 0.4, %v530
        %v540 = vsub.f32 0.4, %v531
        %v541 = vsub.f32 0.4, %v532
        %v542 = vsub.f32 0.4, %v533
        %v543 = vsub.f32 0.4, %v534
        %v544 = vsub.f32 0.4, %v535
        %v545 = vmax.f32 %v536, 0.0
        %v546 = vmax.f32 %v537, 0.0
        %v547 = vmax.f32 %v538, 0.0
        %v548 = vmax.f32 %v539, 0.0
        %v549 = vmax.f32 %v540, 0.0
        %v550 = vmax.f32 %v541, 0.0
        %v551 = vmax.f32 %v542, 0.0
        %v552 = vmax.f32 %v543, 0.0
        %v553 = vmax.f32 %v544, 0.0
        %v554 = vand.u32 2147483647, %v329
        %v555 = vand.u32 2147483647, %v330
        %v556 = vand.u32 2147483647, %v331
        %v557 = vand.u32 2147483647, %v332
        %v558 = vand.u32 2147483647, %v333
        %v559 = vand.u32 2147483647, %v334
        %v560 = vand.u32 2147483647, %v335
        %v561 = vand.u32 2147483647, %v336
        %v562 = vand.u32 2147483647, %v337
        %v563 = vsub.f32 0.4, %v554
        %v564 = vsub.f32 0.4, %v555
        %v565 = vsub.f32 0.4, %v556
        %v566 = vsub.f32 0.4, %v557
        %v567 = vsub.f32 0.4, %v558
        %v568 = vsub.f32 0.4, %v559
        %v569 = vsub.f32 0.4, %v560
        %v570 = vsub.f32 0.4, %v561
        %v571 = vsub.f32 0.4, %v562
        %v572 = vmax.f32 %v563, 0.0
        %v573 = vmax.f32 %v564, 0.0
        %v574 = vmax.f32 %v565, 0.0
        %v575 = vmax.f32 %v566, 0.0
        %v576 = vmax.f32 %v567, 0.0
        %v577 = vmax.f32 %v568, 0.0
        %v578 = vmax.f32 %v569, 0.0
        %v579 = vmax.f32 %v570, 0.0
        %v580 = vmax.f32 %v571, 0.0
        %v581 = vand.u32 2147483647, %v338
        %v582 = vand.u32 2147483647, %v339
        %v583 = vand.u32 2147483647, %v340
        %v584 = vand.u32 2147483647, %v341
        %v585 = vand.u32 2147483647, %v342
        %v586 = vand.u32 2147483647, %v343
        %v587 = vand.u32 2147483647, %v344
        %v588 = vand.u32 2147483647, %v345
        %v589 = vand.u32 2147483647, %v346
        %v590 = vsub.f32 0.4, %v581
        %v591 = vsub.f32 0.4, %v582
        %v592 = vsub.f32 0.4, %v583
        %v593 = vsub.f32 0.4, %v584
        %v594 = vsub.f32 0.4, %v585
        %v595 = vsub.f32 0.4, %v586
        %v596 = vsub.f32 0.4, %v587
        %v597 = vsub.f32 0.4, %v588
        %v598 = vsub.f32 0.4, %v589
        %v599 = vmax.f32 %v590, 0.0
        %v600 = vmax.f32 %v591, 0.0
        %v601 = vmax.f32 %v592, 0.0
        %v602 = vmax.f32 %v593, 0.0
        %v603 = vmax.f32 %v594, 0.0
        %v604 = vmax.f32 %v595, 0.0
        %v605 = vmax.f32 %v596, 0.0
        %v606 = vmax.f32 %v597, 0.0
        %v607 = vmax.f32 %v598, 0.0
        %v608 = vand.u32 2147483647, %v347
        %v609 = vand.u32 2147483647, %v348
        %v610 = vand.u32 2147483647, %v349
        %v611 = vand.u32 2147483647, %v350
        %v612 = vand.u32 2147483647, %v351
        %v613 = vand.u32 2147483647, %v352
        %v614 = vand.u32 2147483647, %v353
        %v615 = vand.u32 2147483647, %v354
        %v616 = vand.u32 2147483647, %v355
        %v617 = vsub.f32 0.4, %v608
        %v618 = vsub.f32 0.4, %v609
        %v619 = vsub.f32 0.4, %v610
        %v620 = vsub.f32 0.4, %v611
        %v621 = vsub.f32 0.4, %v612
        %v622 = vsub.f32 0.4, %v613
        %v623 = vsub.f32 0.4, %v614
        %v624 = vsub.f32 0.4, %v615
        %v625 = vsub.f32 0.4, %v616
        %v626 = vmax.f32 %v617, 0.0
        %v627 = vmax.f32 %v618, 0.0
        %v628 = vmax.f32 %v619, 0.0
        %v629 = vmax.f32 %v620, 0.0
        %v630 = vmax.f32 %v621, 0.0
        %v631 = vmax.f32 %v622, 0.0
        %v632 = vmax.f32 %v623, 0.0
        %v633 = vmax.f32 %v624, 0.0
        %v634 = vmax.f32 %v625, 0.0
        %v635 = vmul.f32 %v257, %v383
        %v636 = vmul.f32 %v258, %v384
        %v637 = vmul.f32 %v259, %v385
        %v638 = vmul.f32 %v260, %v386
        %v639 = vmul.f32 %v261, %v387
        %v640 = vmul.f32 %v262, %v388
        %v641 = vmul.f32 %v263, %v389
        %v642 = vmul.f32 %v264, %v390
        %v643 = vmul.f32 %v265, %v391
        %v644 = vmul.f32 %v284, %v410
        %v645 = vmul.f32 %v285, %v411
        %v646 = vmul.f32 %v286, %v412
        %v647 = vmul.f32 %v287, %v413
        %v648 = vmul.f32 %v288, %v414
        %v649 = vmul.f32 %v289, %v415
        %v650 = vmul.f32 %v290, %v416
        %v651 = vmul.f32 %v291, %v417
        %v652 = vmul.f32 %v292, %v418
        %v653 = vsub.f32 %v635, %v644
        %v654 = vsub.f32 %v636, %v645
        %v655 = vsub.f32 %v637, %v646
        %v656 = vsub.f32 %v638, %v647
        %v657 = vsub.f32 %v639, %v648
        %v658 = vsub.f32 %v640, %v649
        %v659 = vsub.f32 %v641, %v650
        %v660 = vsub.f32 %v642, %v651
        %v661 = vsub.f32 %v643, %v652
        %v662 = vmul.f32 %v266, %v410
        %v663 = vmul.f32 %v267, %v411
        %v664 = vmul.f32 %v268, %v412
        %v665 = vmul.f32 %v269, %v413
        %v666 = vmul.f32 %v270, %v414
        %v667 = vmul.f32 %v271, %v415
        %v668 = vmul.f32 %v272, %v416
        %v669 = vmul.f32 %v273, %v417
        %v670 = vmul.f32 %v274, %v418
        %v671 = vmul.f32 %v293, %v437
        %v672 = vmul.f32 %v294, %v438
        %v673 = vmul.f32 %v295, %v439
        %v674 = vmul.f32 %v296, %v440
        %v675 = vmul.f32 %v297, %v441
        %v676 = vmul.f32 %v298, %v442
        %v677 = vmul.f32 %v299, %v443
        %v678 = vmul.f32 %v300, %v444
        %v679 = vmul.f32 %v301, %v445
        %v680 = vsub.f32 %v662, %v671
        %v681 = vsub.f32 %v663, %v672
        %v682 = vsub.f32 %v664, %v673
        %v683 = vsub.f32 %v665, %v674
        %v684 = vsub.f32 %v666, %v675
        %v685 = vsub.f32 %v667, %v676
        %v686 = vsub.f32 %v668, %v677
        %v687 = vsub.f32 %v669, %v678
        %v688 = vsub.f32 %v670, %v679
        %v689 = vmul.f32 %v275, %v437
        %v690 = vmul.f32 %v276, %v438
        %v691 = vmul.f32 %v277, %v439
        %v692 = vmul.f32 %v278, %v440
        %v693 = vmul.f32 %v279, %v441
        %v694 = vmul.f32 %v280, %v442
        %v695 = vmul.f32 %v281, %v443
        %v696 = vmul.f32 %v282, %v444
        %v697 = vmul.f32 %v283, %v445
        %v698 = vmul.f32 %v302, %v464
        %v699 = vmul.f32 %v303, %v465
        %v700 = vmul.f32 %v304, %v466
        %v701 = vmul.f32 %v305, %v467
        %v702 = vmul.f32 %v306, %v468
        %v703 = vmul.f32 %v307, %v469
        %v704 = vmul.f32 %v308, %v470
        %v705 = vmul.f32 %v309, %v471
        %v706 = vmul.f32 %v310, %v472
        %v707 = vsub.f32 %v689, %v698
        %v708 = vsub.f32 %v690, %v699
        %v709 = vsub.f32 %v691, %v700
        %v710 = vsub.f32 %v692, %v701
        %v711 = vsub.f32 %v693, %v702
        %v712 = vsub.f32 %v694, %v703
        %v713 = vsub.f32 %v695, %v704
        %v714 = vsub.f32 %v696, %v705
        %v715 = vsub.f32 %v697, %v706
        %v716 = vmul.f32 %v284, %v464
        %v717 = vmul.f32 %v285, %v465
        %v718 = vmul.f32 %v286, %v466
        %v719 = vmul.f32 %v287, %v467
        %v720 = vmul.f32 %v288, %v468
        %v721 = vmul.f32 %v289, %v469
        %v722 = vmul.f32 %v290, %v470
        %v723 = vmul.f32 %v291, %v471
        %v724 = vmul.f32 %v292, %v472
        %v725 = vmul.f32 %v311, %v491
        %v726 = vmul.f32 %v312, %v492
        %v727 = vmul.f32 %v313, %v493
        %v728 = vmul.f32 %v314, %v494
        %v729 = vmul.f32 %v315, %v495
        %v730 = vmul.f32 %v316, %v496
        %v731 = vmul.f32 %v317, %v497
        %v732 = vmul.f32 %v318, %v498
        %v733 = vmul.f32 %v319, %v499
        %v734 = vsub.f32 %v716, %v725
        %v735 = vsub.f32 %v717, %v726
        %v736 = vsub.f32 %v718, %v727
        %v737 = vsub.f32 %v719, %v728
        %v738 = vsub.f32 %v720, %v729
        %v739 = vsub.f32 %v721, %v730
        %v740 = vsub.f32 %v722, %v731
        %v741 = vsub.f32 %v723, %v732
        %v742 = vsub.f32 %v724, %v733
        %v743 = vmul.f32 %v293, %v491
        %v744 = vmul.f32 %v294, %v492
        %v745 = vmul.f32 %v295, %v493
        %v746 = vmul.f32 %v296, %v494
        %v747 = vmul.f32 %v297, %v495
        %v748 = vmul.f32 %v298, %v496
        %v749 = vmul.f32 %v299, %v497
        %v750 = vmul.f32 %v300, %v498
        %v751 = vmul.f32 %v301, %v499
        %v752 = vmul.f32 %v320, %v518
        %v753 = vmul.f32 %v321, %v519
        %v754 = vmul.f32 %v322, %v520
        %v755 = vmul.f32 %v323, %v521
        %v756 = vmul.f32 %v324, %v522
        %v757 = vmul.f32 %v325, %v523
        %v758 = vmul.f32 %v326, %v524
        %v759 = vmul.f32 %v327, %v525
        %v760 = vmul.f32 %v328, %v526
        %v761 = vsub.f32 %v743, %v752
        %v762 = vsub.f32 %v744, %v753
        %v763 = vsub.f32 %v745, %v754
        %v764 = vsub.f32 %v746, %v755
        %v765 = vsub.f32 %v747, %v756
        %v766 = vsub.f32 %v748, %v757
        %v767 = vsub.f32 %v749, %v758
        %v768 = vsub.f32 %v750, %v759
        %v769 = vsub.f32 %v751, %v760
        %v770 = vmul.f32 %v302, %v518
        %v771 = vmul.f32 %v303, %v519
        %v772 = vmul.f32 %v304, %v520
        %v773 = vmul.f32 %v305, %v521
        %v774 = vmul.f32 %v306, %v522
        %v775 = vmul.f32 %v307, %v523
        %v776 = vmul.f32 %v308, %v524
        %v777 = vmul.f32 %v309, %v525
        %v778 = vmul.f32 %v310, %v526
        %v779 = vmul.f32 %v329, %v545
        %v780 = vmul.f32 %v330, %v546
        %v781 = vmul.f32 %v331, %v547
        %v782 = vmul.f32 %v332, %v548
        %v783 = vmul.f32 %v333, %v549
        %v784 = vmul.f32 %v334, %v550
        %v785 = vmul.f32 %v335, %v551
        %v786 = vmul.f32 %v336, %v552
        %v787 = vmul.f32 %v337, %v553
        %v788 = vsub.f32 %v770, %v779
        %v789 = vsub.f32 %v771, %v780
        %v790 = vsub.f32 %v772, %v781
        %v791 = vsub.f32 %v773, %v782
        %v792 = vsub.f32 %v774, %v783
        %v793 = vsub.f32 %v775, %v784
        %v794 = vsub.f32 %v776, %v785
        %v795 = vsub.f32 %v777, %v786
        %v796 = vsub.f32 %v778, %v787
        %v797 = vmul.f32 %v311, %v545
        %v798 = vmul.f32 %v312, %v546
        %v799 = vmul.f32 %v313, %v547
        %v800 = vmul.f32 %v314, %v548
        %v801 = vmul.f32 %v315, %v549
        %v802 = vmul.f32 %v316, %v550
        %v803 = vmul.f32 %v317, %v551
        %v804 = vmul.f32 %v318, %v552
        %v805 = vmul.f32 %v319, %v553
        %v806 = vmul.f32 %v338, %v572
        %v807 = vmul.f32 %v339, %v573
        %v808 = vmul.f32 %v340, %v574
        %v809 = vmul.f32 %v341, %v575
        %v810 = vmul.f32 %v342, %v576
        %v811 = vmul.f32 %v343, %v577
        %v812 = vmul.f32 %v344, %v578
        %v813 = vmul.f32 %v345, %v579
        %v814 = vmul.f32 %v346, %v580
        %v815 = vsub.f32 %v797, %v806
        %v816 = vsub.f32 %v798, %v807
        %v817 = vsub.f32 %v799, %v808
        %v818 = vsub.f32 %v800, %v809
        %v819 = vsub.f32 %v801, %v810
        %v820 = vsub.f32 %v802, %v811
        %v821 = vsub.f32 %v803, %v812
        %v822 = vsub.f32 %v804, %v813
        %v823 = vsub.f32 %v805, %v814
        %v824 = vmul.f32 %v320, %v572
        %v825 = vmul.f32 %v321, %v573
        %v826 = vmul.f32 %v322, %v574
        %v827 = vmul.f32 %v323, %v575
        %v828 = vmul.f32 %v324, %v576
        %v829 = vmul.f32 %v325, %v577
        %v830 = vmul.f32 %v326, %v578
        %v831 = vmul.f32 %v327, %v579
        %v832 = vmul.f32 %v328, %v580
        %v833 = vmul.f32 %v347, %v599
        %v834 = vmul.f32 %v348, %v600
        %v835 = vmul.f32 %v349, %v601
        %v836 = vmul.f32 %v350, %v602
        %v837 = vmul.f32 %v351, %v603
        %v838 = vmul.f32 %v352, %v604
        %v839 = vmul.f32 %v353, %v605
        %v840 = vmul.f32 %v354, %v606
        %v841 = vmul.f32 %v355, %v607
        %v842 = vsub.f32 %v824, %v833
        %v843 = vsub.f32 %v825, %v834
        %v844 = vsub.f32 %v826, %v835
        %v845 = vsub.f32 %v827, %v836
        %v846 = vsub.f32 %v828, %v837
        %v847 = vsub.f32 %v829, %v838
        %v848 = vsub.f32 %v830, %v839
        %v849 = vsub.f32 %v831, %v840
        %v850 = vsub.f32 %v832, %v841
        %v851 = vmul.f32 %v329, %v599
        %v852 = vmul.f32 %v330, %v600
        %v853 = vmul.f32 %v331, %v601
        %v854 = vmul.f32 %v332, %v602
        %v855 = vmul.f32 %v333, %v603
        %v856 = vmul.f32 %v334, %v604
        %v857 = vmul.f32 %v335, %v605
        %v858 = vmul.f32 %v336, %v606
        %v859 = vmul.f32 %v337, %v607
        %v860 = vmul.f32 %v356, %v626
        %v861 = vmul.f32 %v357, %v627
        %v862 = vmul.f32 %v358, %v628
        %v863 = vmul.f32 %v359, %v629
        %v864 = vmul.f32 %v360, %v630
        %v865 = vmul.f32 %v361, %v631
        %v866 = vmul.f32 %v362, %v632
        %v867 = vmul.f32 %v363, %v633
        %v868 = vmul.f32 %v364, %v634
        %v869 = vsub.f32 %v851, %v860
        %v870 = vsub.f32 %v852, %v861
        %v871 = vsub.f32 %v853, %v862
        %v872 = vsub.f32 %v854, %v863
        %v873 = vsub.f32 %v855, %v864
        %v874 = vsub.f32 %v856, %v865
        %v875 = vsub.f32 %v857, %v866
        %v876 = vsub.f32 %v858, %v867
        %v877 = vsub.f32 %v859, %v868
        %v878 = vmul.f32 %v257, %v653
        %v879 = vmul.f32 %v258, %v654
        %v880 = vmul.f32 %v259, %v655
        %v881 = vmul.f32 %v260, %v656
        %v882 = vmul.f32 %v261, %v657
        %v883 = vmul.f32 %v262, %v658
        %v884 = vmul.f32 %v263, %v659
        %v885 = vmul.f32 %v264, %v660
        %v886 = vmul.f32 %v265, %v661
        %v887 = vmul.f32 %v293, %v680
        %v888 = vmul.f32 %v294, %v681
        %v889 = vmul.f32 %v295, %v682
        %v890 = vmul.f32 %v296, %v683
        %v891 = vmul.f32 %v297, %v684
        %v892 = vmul.f32 %v298, %v685
        %v893 = vmul.f32 %v299, %v686
        %v894 = vmul.f32 %v300, %v687
        %v895 = vmul.f32 %v301, %v688
        %v896 = vsub.f32 %v878, %v887
        %v897 = vsub.f32 %v879, %v888
        %v898 = vsub.f32 %v880, %v889
        %v899 = vsub.f32 %v881, %v890
        %v900 = vsub.f32 %v882, %v891
        %v901 = vsub.f32 %v883, %v892
        %v902 = vsub.f32 %v884, %v893
        %v903 = vsub.f32 %v885, %v894
        %v904 = vsub.f32 %v886, %v895
        %v905 = vmul.f32 %v266, %v680
        %v906 = vmul.f32 %v267, %v681
        %v907 = vmul.f32 %v268, %v682
        %v908 = vmul.f32 %v269, %v683
        %v909 = vmul.f32 %v270, %v684
        %v910 = vmul.f32 %v271, %v685
        %v911 = vmul.f32 %v272, %v686
        %v912 = vmul.f32 %v273, %v687
        %v913 = vmul.f32 %v274, %v688
        %v914 = vmul.f32 %v302, %v707
        %v915 = vmul.f32 %v303, %v708
        %v916 = vmul.f32 %v304, %v709
        %v917 = vmul.f32 %v305, %v710
        %v918 = vmul.f32 %v306, %v711
        %v919 = vmul.f32 %v307, %v712
        %v920 = vmul.f32 %v308, %v713
        %v921 = vmul.f32 %v309, %v714
        %v922 = vmul.f32 %v310, %v715
        %v923 = vsub.f32 %v905, %v914
        %v924 = vsub.f32 %v906, %v915
        %v925 = vsub.f32 %v907, %v916
        %v926 = vsub.f32 %v908, %v917
        %v927 = vsub.f32 %v909, %v918
        %v928 = vsub.f32 %v910, %v919
        %v929 = vsub.f32 %v911, %v920
        %v930 = vsub.f32 %v912, %v921
        %v931 = vsub.f32 %v913, %v922
        %v932 = vmul.f32 %v275, %v707
        %v933 = vmul.f32 %v276, %v708
        %v934 = vmul.f32 %v277, %v709
        %v935 = vmul.f32 %v278, %v710
        %v936 = vmul.f32 %v279, %v711
        %v937 = vmul.f32 %v280, %v712
        %v938 = vmul.f32 %v281, %v713
        %v939 = vmul.f32 %v282, %v714
        %v940 = vmul.f32 %v283, %v715
        %v941 = vmul.f32 %v311, %v734
        %v942 = vmul.f32 %v312, %v735
        %v943 = vmul.f32 %v313, %v736
        %v944 = vmul.f32 %v314, %v737
        %v945 = vmul.f32 %v315, %v738
        %v946 = vmul.f32 %v316, %v739
        %v947 = vmul.f32 %v317, %v740
        %v948 = vmul.f32 %v318, %v741
        %v949 = vmul.f32 %v319, %v742
        %v950 = vsub.f32 %v932, %v941
        %v951 = vsub.f32 %v933, %v942
        %v952 = vsub.f32 %v934, %v943
        %v953 = vsub.f32 %v935, %v944
        %v954 = vsub.f32 %v936, %v945
        %v955 = vsub.f32 %v937, %v946
        %v956 = vsub.f32 %v938, %v947
        %v957 = vsub.f32 %v939, %v948
        %v958 = vsub.f32 %v940, %v949
        %v959 = vmul.f32 %v284, %v734
        %v960 = vmul.f32 %v285, %v735
        %v961 = vmul.f32 %v286, %v736
        %v962 = vmul.f32 %v287, %v737
        %v963 = vmul.f32 %v288, %v738
        %v964 = vmul.f32 %v289, %v739
        %v965 = vmul.f32 %v290, %v740
        %v966 = vmul.f32 %v291, %v741
        %v967 = vmul.f32 %v292, %v742
        %v968 = vmul.f32 %v320, %v761
        %v969 = vmul.f32 %v321, %v762
        %v970 = vmul.f32 %v322, %v763
        %v971 = vmul.f32 %v323, %v764
        %v972 = vmul.f32 %v324, %v765
        %v973 = vmul.f32 %v325, %v766
        %v974 = vmul.f32 %v326, %v767
        %v975 = vmul.f32 %v327, %v768
        %v976 = vmul.f32 %v328, %v769
        %v977 = vsub.f32 %v959, %v968
        %v978 = vsub.f32 %v960, %v969
        %v979 = vsub.f32 %v961, %v970
        %v980 = vsub.f32 %v962, %v971
        %v981 = vsub.f32 %v963, %v972
        %v982 = vsub.f32 %v964, %v973
        %v983 = vsub.f32 %v965, %v974
        %v984 = vsub.f32 %v966, %v975
        %v985 = vsub.f32 %v967, %v976
        %v986 = vmul.f32 %v293, %v761
        %v987 = vmul.f32 %v294, %v762
        %v988 = vmul.f32 %v295, %v763
        %v989 = vmul.f32 %v296, %v764
        %v990 = vmul.f32 %v297, %v765
        %v991 = vmul.f32 %v298, %v766
        %v992 = vmul.f32 %v299, %v767
        %v993 = vmul.f32 %v300, %v768
        %v994 = vmul.f32 %v301, %v769
        %v995 = vmul.f32 %v329, %v788
        %v996 = vmul.f32 %v330, %v789
        %v997 = vmul.f32 %v331, %v790
        %v998 = vmul.f32 %v332, %v791
        %v999 = vmul.f32 %v333, %v792
        %v1000 = vmul.f32 %v334, %v793
        %v1001 = vmul.f32 %v335, %v794
        %v1002 = vmul.f32 %v336, %v795
        %v1003 = vmul.f32 %v337, %v796
        %v1004 = vsub.f32 %v986, %v995
        %v1005 = vsub.f32 %v987, %v996
        %v1006 = vsub.f32 %v988, %v997
        %v1007 = vsub.f32 %v989, %v998
        %v1008 = vsub.f32 %v990, %v999
        %v1009 = vsub.f32 %v991, %v1000
        %v1010 = vsub.f32 %v992, %v1001
        %v1011 = vsub.f32 %v993, %v1002
        %v1012 = vsub.f32 %v994, %v1003
        %v1013 = vmul.f32 %v302, %v788
        %v1014 = vmul.f32 %v303, %v789
        %v1015 = vmul.f32 %v304, %v790
        %v1016 = vmul.f32 %v305, %v791
        %v1017 = vmul.f32 %v306, %v792
        %v1018 = vmul.f32 %v307, %v793
        %v1019 = vmul.f32 %v308, %v794
        %v1020 = vmul.f32 %v309, %v795
        %v1021 = vmul.f32 %v310, %v796
        %v1022 = vmul.f32 %v338, %v815
        %v1023 = vmul.f32 %v339, %v816
        %v1024 = vmul.f32 %v340, %v817
        %v1025 = vmul.f32 %v341, %v818
        %v1026 = vmul.f32 %v342, %v819
        %v1027 = vmul.f32 %v343, %v820
        %v1028 = vmul.f32 %v344, %v821
        %v1029 = vmul.f32 %v345, %v822
        %v1030 = vmul.f32 %v346, %v823
        %v1031 = vsub.f32 %v1013, %v1022
        %v1032 = vsub.f32 %v1014, %v1023
        %v1033 = vsub.f32 %v1015, %v1024
        %v1034 = vsub.f32 %v1016, %v1025
        %v1035 = vsub.f32 %v1017, %v1026
        %v1036 = vsub.f32 %v1018, %v1027
        %v1037 = vsub.f32 %v1019, %v1028
        %v1038 = vsub.f32 %v1020, %v1029
        %v1039 = vsub.f32 %v1021, %v1030
        %v1040 = vmul.f32 %v311, %v815
        %v1041 = vmul.f32 %v312, %v816
        %v1042 = vmul.f32 %v313, %v817
        %v1043 = vmul.f32 %v314, %v818
        %v1044 = vmul.f32 %v315, %v819
        %v1045 = vmul.f32 %v316, %v820
        %v1046 = vmul.f32 %v317, %v821
        %v1047 = vmul.f32 %v318, %v822
        %v1048 = vmul.f32 %v319, %v823
        %v1049 = vmul.f32 %v347, %v842
        %v1050 = vmul.f32 %v348, %v843
        %v1051 = vmul.f32 %v349, %v844
        %v1052 = vmul.f32 %v350, %v845
        %v1053 = vmul.f32 %v351, %v846
        %v1054 = vmul.f32 %v352, %v847
        %v1055 = vmul.f32 %v353, %v848
        %v1056 = vmul.f32 %v354, %v849
        %v1057 = vmul.f32 %v355, %v850
        %v1058 = vsub.f32 %v1040, %v1049
        %v1059 = vsub.f32 %v1041, %v1050
        %v1060 = vsub.f32 %v1042, %v1051
        %v1061 = vsub.f32 %v1043, %v1052
        %v1062 = vsub.f32 %v1044, %v1053
        %v1063 = vsub.f32 %v1045, %v1054
        %v1064 = vsub.f32 %v1046, %v1055
        %v1065 = vsub.f32 %v1047, %v1056
        %v1066 = vsub.f32 %v1048, %v1057
        %v1067 = vmul.f32 %v320, %v842
        %v1068 = vmul.f32 %v321, %v843
        %v1069 = vmul.f32 %v322, %v844
        %v1070 = vmul.f32 %v323, %v845
        %v1071 = vmul.f32 %v324, %v846
        %v1072 = vmul.f32 %v325, %v847
        %v1073 = vmul.f32 %v326, %v848
        %v1074 = vmul.f32 %v327, %v849
        %v1075 = vmul.f32 %v328, %v850
        %v1076 = vmul.f32 %v356, %v869
        %v1077 = vmul.f32 %v357, %v870
        %v1078 = vmul.f32 %v358, %v871
        %v1079 = vmul.f32 %v359, %v872
        %v1080 = vmul.f32 %v360, %v873
        %v1081 = vmul.f32 %v361, %v874
        %v1082 = vmul.f32 %v362, %v875
        %v1083 = vmul.f32 %v363, %v876
        %v1084 = vmul.f32 %v364, %v877
        %v1085 = vsub.f32 %v1067, %v1076
        %v1086 = vsub.f32 %v1068, %v1077
        %v1087 = vsub.f32 %v1069, %v1078
        %v1088 = vsub.f32 %v1070, %v1079
        %v1089 = vsub.f32 %v1071, %v1080
        %v1090 = vsub.f32 %v1072, %v1081
        %v1091 = vsub.f32 %v1073, %v1082
        %v1092 = vsub.f32 %v1074, %v1083
        %v1093 = vsub.f32 %v1075, %v1084
        %1094 = vst [vmem:[#allocation2 + $0x48] sm:$0xff] %v896
        %1095 = vst [vmem:[#allocation2 + $0x50] sm:$0xff] %v897
        %1096 = vst [vmem:[#allocation2 + $0x58] sm:$0xff] %v898
        %1097 = vst [vmem:[#allocation2 + $0x60] sm:$0xff] %v899
        %1098 = vst [vmem:[#allocation2 + $0x68] sm:$0xff] %v900
        %1099 = vst [vmem:[#allocation2 + $0x70] sm:$0xff] %v901
        %1100 = vst [vmem:[#allocation2 + $0x78] sm:$0xff] %v902
        %1101 = vst [vmem:[#allocation2 + $0x80] sm:$0xff] %v903
        %1102 = vst [vmem:[#allocation2 + $0x88] sm:$0xff] %v904
        %1103 = vst [vmem:[#allocation2 + $0x90] sm:$0xff] %v923
        %1104 = vst [vmem:[#allocation2 + $0x98] sm:$0xff] %v924
        %1105 = vst [vmem:[#allocation2 + $0xa0] sm:$0xff] %v925
        %1106 = vst [vmem:[#allocation2 + $0xa8] sm:$0xff] %v926
        %1107 = vst [vmem:[#allocation2 + $0xb0] sm:$0xff] %v927
        %1108 = vst [vmem:[#allocation2 + $0xb8] sm:$0xff] %v928
        %1109 = vst [vmem:[#allocation2 + $0xc0] sm:$0xff] %v929
        %1110 = vst [vmem:[#allocation2 + $0xc8] sm:$0xff] %v930
        %1111 = vst [vmem:[#allocation2 + $0xd0] sm:$0xff] %v931
        %1112 = vst [vmem:[#allocation2 + $0xd8] sm:$0xff] %v950
        %1113 = vst [vmem:[#allocation2 + $0xe0] sm:$0xff] %v951
        %1114 = vst [vmem:[#allocation2 + $0xe8] sm:$0xff] %v952
        %1115 = vst [vmem:[#allocation2 + $0xf0] sm:$0xff] %v953
        %1116 = vst [vmem:[#allocation2 + $0xf8] sm:$0xff] %v954
        %1117 = vst [vmem:[#allocation2 + $0x100] sm:$0xff] %v955
        %1118 = vst [vmem:[#allocation2 + $0x108] sm:$0xff] %v956
        %1119 = vst [vmem:[#allocation2 + $0x110] sm:$0xff] %v957
        %1120 = vst [vmem:[#allocation2 + $0x118] sm:$0xff] %v958
        %1121 = vst [vmem:[#allocation2 + $0x120] sm:$0xff] %v977
        %1122 = vst [vmem:[#allocation2 + $0x128] sm:$0xff] %v978
        %1123 = vst [vmem:[#allocation2 + $0x130] sm:$0xff] %v979
        %1124 = vst [vmem:[#allocation2 + $0x138] sm:$0xff] %v980
        %1125 = vst [vmem:[#allocation2 + $0x140] sm:$0xff] %v981
        %1126 = vst [vmem:[#allocation2 + $0x148] sm:$0xff] %v982
        %1127 = vst [vmem:[#allocation2 + $0x150] sm:$0xff] %v983
        %1128 = vst [vmem:[#allocation2 + $0x158] sm:$0xff] %v984
        %1129 = vst [vmem:[#allocation2 + $0x160] sm:$0xff] %v985
        %1130 = vst [vmem:[#allocation2 + $0x168] sm:$0xff] %v1004
        %1131 = vst [vmem:[#allocation2 + $0x170] sm:$0xff] %v1005
        %1132 = vst [vmem:[#allocation2 + $0x178] sm:$0xff] %v1006
        %1133 = vst [vmem:[#allocation2 + $0x180] sm:$0xff] %v1007
        %1134 = vst [vmem:[#allocation2 + $0x188] sm:$0xff] %v1008
        %1135 = vst [vmem:[#allocation2 + $0x190] sm:$0xff] %v1009
        %1136 = vst [vmem:[#allocation2 + $0x198] sm:$0xff] %v1010
        %1137 = vst [vmem:[#allocation2 + $0x1a0] sm:$0xff] %v1011
        %1138 = vst [vmem:[#allocation2 + $0x1a8] sm:$0xff] %v1012
        %1139 = vst [vmem:[#allocation2 + $0x1b0] sm:$0xff] %v1031
        %1140 = vst [vmem:[#allocation2 + $0x1b8] sm:$0xff] %v1032
        %1141 = vst [vmem:[#allocation2 + $0x1c0] sm:$0xff] %v1033
        %1142 = vst [vmem:[#allocation2 + $0x1c8] sm:$0xff] %v1034
        %1143 = vst [vmem:[#allocation2 + $0x1d0] sm:$0xff] %v1035
        %1144 = vst [vmem:[#allocation2 + $0x1d8] sm:$0xff] %v1036
        %1145 = vst [vmem:[#allocation2 + $0x1e0] sm:$0xff] %v1037
        %1146 = vst [vmem:[#allocation2 + $0x1e8] sm:$0xff] %v1038
        %1147 = vst [vmem:[#allocation2 + $0x1f0] sm:$0xff] %v1039
        %1148 = vst [vmem:[#allocation2 + $0x1f8] sm:$0xff] %v1058
        %1149 = vst [vmem:[#allocation2 + $0x200] sm:$0xff] %v1059
        %1150 = vst [vmem:[#allocation2 + $0x208] sm:$0xff] %v1060
        %1151 = vst [vmem:[#allocation2 + $0x210] sm:$0xff] %v1061
        %1152 = vst [vmem:[#allocation2 + $0x218] sm:$0xff] %v1062
        %1153 = vst [vmem:[#allocation2 + $0x220] sm:$0xff] %v1063
        %1154 = vst [vmem:[#allocation2 + $0x228] sm:$0xff] %v1064
        %1155 = vst [vmem:[#allocation2 + $0x230] sm:$0xff] %v1065
        %1156 = vst [vmem:[#allocation2 + $0x238] sm:$0xff] %v1066
        %1157 = vst [vmem:[#allocation2 + $0x240] sm:$0xff] %v1085
        %1158 = vst [vmem:[#allocation2 + $0x248] sm:$0xff] %v1086
        %1159 = vst [vmem:[#allocation2 + $0x250] sm:$0xff] %v1087
        %1160 = vst [vmem:[#allocation2 + $0x258] sm:$0xff] %v1088
        %1161 = vst [vmem:[#allocation2 + $0x260] sm:$0xff] %v1089
        %1162 = vst [vmem:[#allocation2 + $0x268] sm:$0xff] %v1090
        %1163 = vst [vmem:[#allocation2 + $0x270] sm:$0xff] %v1091
        %1164 = vst [vmem:[#allocation2 + $0x278] sm:$0xff] %v1092
        %1165 = vst [vmem:[#allocation2 + $0x280] sm:$0xff] %v1093
        %v1166 = vld [vmem:[#allocation6] sm:$0xff]
        %v1167 = vld [vmem:[#allocation6 + $0x8] sm:$0xff]
        %v1168 = vld [vmem:[#allocation6 + $0x10] sm:$0xff]
        %v1169 = vld [vmem:[#allocation6 + $0x18] sm:$0xff]
        %v1170 = vld [vmem:[#allocation6 + $0x20] sm:$0xff]
        %v1171 = vld [vmem:[#allocation6 + $0x28] sm:$0xff]
        %v1172 = vld [vmem:[#allocation6 + $0x30] sm:$0xff]
        %v1173 = vld [vmem:[#allocation6 + $0x38] sm:$0xff]
        %v1174 = vld [vmem:[#allocation6 + $0x40] sm:$0xff]
        %v1175 = vld [vmem:[#allocation6 + $0x48] sm:$0xff]
        %v1176 = vld [vmem:[#allocation6 + $0x50] sm:$0xff]
        %v1177 = vld [vmem:[#allocation6 + $0x58] sm:$0xff]
        %v1178 = vld [vmem:[#allocation2] sm:$0xff]
        %v1179 = vld [vmem:[#allocation2 + $0x8] sm:$0xff]
        %v1180 = vld [vmem:[#allocation2 + $0x10] sm:$0xff]
        %v1181 = vld [vmem:[#allocation2 + $0x18] sm:$0xff]
        %v1182 = vld [vmem:[#allocation2 + $0x20] sm:$0xff]
        %v1183 = vld [vmem:[#allocation2 + $0x28] sm:$0xff]
        %v1184 = vld [vmem:[#allocation2 + $0x30] sm:$0xff]
        %v1185 = vld [vmem:[#allocation2 + $0x38] sm:$0xff]
        %v1186 = vld [vmem:[#allocation2 + $0x40] sm:$0xff]
        %v1187 = vld [vmem:[#allocation2 + $0x48] sm:$0xff]
        %v1188 = vld [vmem:[#allocation2 + $0x50] sm:$0xff]
        %v1189 = vld [vmem:[#allocation2 + $0x58] sm:$0xff]
        %v1190 = vld [vmem:[#allocation2 + $0x60] sm:$0xff]
        %v1191 = vld [vmem:[#allocation2 + $0x68] sm:$0xff]
        %v1192 = vld [vmem:[#allocation2 + $0x70] sm:$0xff]
        %v1193 = vld [vmem:[#allocation2 + $0x78] sm:$0xff]
        %v1194 = vld [vmem:[#allocation2 + $0x80] sm:$0xff]
        %v1195 = vld [vmem:[#allocation2 + $0x88] sm:$0xff]
        %v1196 = vld [vmem:[#allocation2 + $0x90] sm:$0xff]
        %v1197 = vld [vmem:[#allocation2 + $0x98] sm:$0xff]
        %v1198 = vld [vmem:[#allocation2 + $0xa0] sm:$0xff]
        %v1199 = vld [vmem:[#allocation2 + $0xa8] sm:$0xff]
        %v1200 = vld [vmem:[#allocation2 + $0xb0] sm:$0xff]
        %v1201 = vld [vmem:[#allocation2 + $0xb8] sm:$0xff]
        %v1202 = vld [vmem:[#allocation2 + $0xc0] sm:$0xff]
        %v1203 = vld [vmem:[#allocation2 + $0xc8] sm:$0xff]
        %v1204 = vld [vmem:[#allocation2 + $0xd0] sm:$0xff]
        %v1205 = vld [vmem:[#allocation2 + $0xd8] sm:$0xff]
        %v1206 = vld [vmem:[#allocation2 + $0xe0] sm:$0xff]
        %v1207 = vld [vmem:[#allocation2 + $0xe8] sm:$0xff]
        %v1208 = vld [vmem:[#allocation2 + $0xf0] sm:$0xff]
        %v1209 = vld [vmem:[#allocation2 + $0xf8] sm:$0xff]
        %v1210 = vld [vmem:[#allocation2 + $0x100] sm:$0xff]
        %v1211 = vld [vmem:[#allocation2 + $0x108] sm:$0xff]
        %v1212 = vld [vmem:[#allocation2 + $0x110] sm:$0xff]
        %v1213 = vld [vmem:[#allocation2 + $0x118] sm:$0xff]
        %v1214 = vld [vmem:[#allocation2 + $0x120] sm:$0xff]
        %v1215 = vld [vmem:[#allocation2 + $0x128] sm:$0xff]
        %v1216 = vld [vmem:[#allocation2 + $0x130] sm:$0xff]
        %v1217 = vld [vmem:[#allocation2 + $0x138] sm:$0xff]
        %v1218 = vld [vmem:[#allocation2 + $0x140] sm:$0xff]
        %v1219 = vld [vmem:[#allocation2 + $0x148] sm:$0xff]
        %v1220 = vld [vmem:[#allocation2 + $0x150] sm:$0xff]
        %v1221 = vld [vmem:[#allocation2 + $0x158] sm:$0xff]
        %v1222 = vld [vmem:[#allocation2 + $0x160] sm:$0xff]
        %v1223 = vld [vmem:[#allocation2 + $0x168] sm:$0xff]
        %v1224 = vld [vmem:[#allocation2 + $0x170] sm:$0xff]
        %v1225 = vld [vmem:[#allocation2 + $0x178] sm:$0xff]
        %v1226 = vld [vmem:[#allocation2 + $0x180] sm:$0xff]
        %v1227 = vld [vmem:[#allocation2 + $0x188] sm:$0xff]
        %v1228 = vld [vmem:[#allocation2 + $0x190] sm:$0xff]
        %v1229 = vld [vmem:[#allocation2 + $0x198] sm:$0xff]
        %v1230 = vld [vmem:[#allocation2 + $0x1a0] sm:$0xff]
        %v1231 = vld [vmem:[#allocation2 + $0x1a8] sm:$0xff]
        %v1232 = vld [vmem:[#allocation2 + $0x1b0] sm:$0xff]
        %v1233 = vld [vmem:[#allocation2 + $0x1b8] sm:$0xff]
        %v1234 = vld [vmem:[#allocation2 + $0x1c0] sm:$0xff]
        %v1235 = vld [vmem:[#allocation2 + $0x1c8] sm:$0xff]
        %v1236 = vld [vmem:[#allocation2 + $0x1d0] sm:$0xff]
        %v1237 = vld [vmem:[#allocation2 + $0x1d8] sm:$0xff]
        %v1238 = vld [vmem:[#allocation2 + $0x1e0] sm:$0xff]
        %v1239 = vld [vmem:[#allocation2 + $0x1e8] sm:$0xff]
        %v1240 = vld [vmem:[#allocation2 + $0x1f0] sm:$0xff]
        %v1241 = vld [vmem:[#allocation2 + $0x1f8] sm:$0xff]
        %v1242 = vld [vmem:[#allocation2 + $0x200] sm:$0xff]
        %v1243 = vld [vmem:[#allocation2 + $0x208] sm:$0xff]
        %v1244 = vld [vmem:[#allocation2 + $0x210] sm:$0xff]
        %v1245 = vld [vmem:[#allocation2 + $0x218] sm:$0xff]
        %v1246 = vld [vmem:[#allocation2 + $0x220] sm:$0xff]
        %v1247 = vld [vmem:[#allocation2 + $0x228] sm:$0xff]
        %v1248 = vld [vmem:[#allocation2 + $0x230] sm:$0xff]
        %v1249 = vld [vmem:[#allocation2 + $0x238] sm:$0xff]
        %v1250 = vld [vmem:[#allocation2 + $0x240] sm:$0xff]
        %v1251 = vld [vmem:[#allocation2 + $0x248] sm:$0xff]
        %v1252 = vld [vmem:[#allocation2 + $0x250] sm:$0xff]
        %v1253 = vld [vmem:[#allocation2 + $0x258] sm:$0xff]
        %v1254 = vld [vmem:[#allocation2 + $0x260] sm:$0xff]
        %v1255 = vld [vmem:[#allocation2 + $0x268] sm:$0xff]
        %v1256 = vld [vmem:[#allocation2 + $0x270] sm:$0xff]
        %v1257 = vld [vmem:[#allocation2 + $0x278] sm:$0xff]
        %v1258 = vld [vmem:[#allocation2 + $0x280] sm:$0xff]
        %vm1259 = vcmask 64512
        %v1261 = vsel %vm1259, %v1171, 0
        %v1264 = vsel %vm1259, %v1177, 0
        %1266 = vmatprep.subr.mxu0 0.0
        %1267 = vmatpush1.msra.mxu0 %v1178
        %1268 = vmatprep.subr.mxu0 0.0
        %1269 = vmatpush1.msra.mxu0 %v1179
        %1270 = vmatprep.subr.mxu0 0.0
        %1271 = vmatpush1.msra.mxu0 %v1180
        %1272 = vmatprep.subr.mxu0 0.0
        %1273 = vmatpush1.msra.mxu0 %v1181
        %1274 = vmatprep.subr.mxu0 0.0
        %1275 = vmatpush1.msra.mxu0 %v1182
        %1276 = vmatprep.subr.mxu0 0.0
        %1277 = vmatpush1.msra.mxu0 %v1183
        %1278 = vmatprep.subr.mxu0 0.0
        %1279 = vmatpush1.msra.mxu0 %v1184
        %1280 = vmatprep.subr.mxu0 0.0
        %1281 = vmatpush1.msra.mxu0 %v1185
        %1282 = vmatprep.subr.mxu0 0.0
        %1283 = vmatpush1.msra.mxu0 %v1186
        %1284 = vmatprep.subr.mxu0 0.0
        %1285 = vmatpush1.msra.mxu0 %v1187
        %1286 = vmatprep.subr.mxu0 0.0
        %1287 = vmatpush1.msra.mxu0 %v1188
        %1288 = vmatprep.subr.mxu0 0.0
        %1289 = vmatpush1.msra.mxu0 %v1189
        %1290 = vmatprep.subr.mxu0 0.0
        %1291 = vmatpush1.msra.mxu0 %v1190
        %1292 = vmatprep.subr.mxu0 0.0
        %1293 = vmatpush1.msra.mxu0 %v1191
        %1294 = vmatprep.subr.mxu0 0.0
        %1295 = vmatpush1.msra.mxu0 %v1192
        %1296 = vmatprep.subr.mxu0 0.0
        %1297 = vmatpush1.msra.mxu0 %v1193
        %1298 = vmatprep.subr.mxu0 0.0
        %1299 = vmatpush1.msra.mxu0 %v1194
        %1300 = vmatprep.subr.mxu0 0.0
        %1301 = vmatpush1.msra.mxu0 %v1195
        %1302 = vmatprep.subr.mxu0 0.0
        %1303 = vmatpush1.msra.mxu0 %v1196
        %1304 = vmatprep.subr.mxu0 0.0
        %1305 = vmatpush1.msra.mxu0 %v1197
        %1306 = vmatprep.subr.mxu0 0.0
        %1307 = vmatpush1.msra.mxu0 %v1198
        %1308 = vmatprep.subr.mxu0 0.0
        %1309 = vmatpush1.msra.mxu0 %v1199
        %1310 = vmatprep.subr.mxu0 0.0
        %1311 = vmatpush1.msra.mxu0 %v1200
        %1312 = vmatprep.subr.mxu0 0.0
        %1313 = vmatpush1.msra.mxu0 %v1201
        %1314 = vmatprep.subr.mxu0 0.0
        %1315 = vmatpush1.msra.mxu0 %v1202
        %1316 = vmatprep.subr.mxu0 0.0
        %1317 = vmatpush1.msra.mxu0 %v1203
        %1318 = vmatprep.subr.mxu0 0.0
        %1319 = vmatpush1.msra.mxu0 %v1204
        %1320 = vmatprep.subr.mxu0 0.0
        %1321 = vmatpush1.msra.mxu0 %v1205
        %1322 = vmatprep.subr.mxu0 0.0
        %1323 = vmatpush1.msra.mxu0 %v1206
        %1324 = vmatprep.subr.mxu0 0.0
        %1325 = vmatpush1.msra.mxu0 %v1207
        %1326 = vmatprep.subr.mxu0 0.0
        %1327 = vmatpush1.msra.mxu0 %v1208
        %1328 = vmatprep.subr.mxu0 0.0
        %1329 = vmatpush1.msra.mxu0 %v1209
        %1330 = vmatprep.mubr.f32.mxu0 %v1167
        %1331 = vmatmul.mubr.f32.gmra.mrb[0].mxu0 %v1166
        %v1332 = vpop.f32.mrb[0].mxu0
        %v1333 = vadd.f32 0.0, %v1332
        %v1334 = vpop.f32.mrb[0].mxu0
        %1335 = vmatprep.mubr.f32.mxu0 %v1173
        %1336 = vmatmul.mubr.f32.gmra.mrb[0].mxu0 %v1172
        %v1337 = vpop.f32.mrb[0].mxu0
        %v1338 = vadd.f32 0.0, %v1337
        %v1339 = vpop.f32.mrb[0].mxu0
        %1340 = vdwg.mxu0
        %1341 = vmatprep.subr.mxu0 0.0
        %1342 = vmatpush1.msra.mxu0 %v1210
        %1343 = vmatprep.subr.mxu0 0.0
        %1344 = vmatpush1.msra.mxu0 %v1211
        %1345 = vmatprep.subr.mxu0 0.0
        %1346 = vmatpush1.msra.mxu0 %v1212
        %1347 = vmatprep.subr.mxu0 0.0
        %1348 = vmatpush1.msra.mxu0 %v1213
        %1349 = vmatprep.subr.mxu0 0.0
        %1350 = vmatpush1.msra.mxu0 %v1214
        %1351 = vmatprep.subr.mxu0 0.0
        %1352 = vmatpush1.msra.mxu0 %v1215
        %1353 = vmatprep.subr.mxu0 0.0
        %1354 = vmatpush1.msra.mxu0 %v1216
        %1355 = vmatprep.subr.mxu0 0.0
        %1356 = vmatpush1.msra.mxu0 %v1217
        %1357 = vmatprep.subr.mxu0 0.0
        %1358 = vmatpush1.msra.mxu0 %v1218
        %1359 = vmatprep.subr.mxu0 0.0
        %1360 = vmatpush1.msra.mxu0 %v1219
        %1361 = vmatprep.subr.mxu0 0.0
        %1362 = vmatpush1.msra.mxu0 %v1220
        %1363 = vmatprep.subr.mxu0 0.0
        %1364 = vmatpush1.msra.mxu0 %v1221
        %1365 = vmatprep.subr.mxu0 0.0
        %1366 = vmatpush1.msra.mxu0 %v1222
        %1367 = vmatprep.subr.mxu0 0.0
        %1368 = vmatpush1.msra.mxu0 %v1223
        %1369 = vmatprep.subr.mxu0 0.0
        %1370 = vmatpush1.msra.mxu0 %v1224
        %1371 = vmatprep.subr.mxu0 0.0
        %1372 = vmatpush1.msra.mxu0 %v1225
        %1373 = vmatprep.subr.mxu0 0.0
        %1374 = vmatpush1.msra.mxu0 %v1226
        %1375 = vmatprep.subr.mxu0 0.0
        %1376 = vmatpush1.msra.mxu0 %v1227
        %1377 = vmatprep.subr.mxu0 0.0
        %1378 = vmatpush1.msra.mxu0 %v1228
        %1379 = vmatprep.subr.mxu0 0.0
        %1380 = vmatpush1.msra.mxu0 %v1229
        %1381 = vmatprep.subr.mxu0 0.0
        %1382 = vmatpush1.msra.mxu0 %v1230
        %1383 = vmatprep.subr.mxu0 0.0
        %1384 = vmatpush1.msra.mxu0 %v1231
        %1385 = vmatprep.subr.mxu0 0.0
        %1386 = vmatpush1.msra.mxu0 %v1232
        %1387 = vmatprep.subr.mxu0 0.0
        %1388 = vmatpush1.msra.mxu0 %v1233
        %1389 = vmatprep.subr.mxu0 0.0
        %1390 = vmatpush1.msra.mxu0 %v1234
        %1391 = vmatprep.subr.mxu0 0.0
        %1392 = vmatpush1.msra.mxu0 %v1235
        %1393 = vmatprep.subr.mxu0 0.0
        %1394 = vmatpush1.msra.mxu0 %v1236
        %1395 = vmatprep.subr.mxu0 0.0
        %1396 = vmatpush1.msra.mxu0 %v1237
        %1397 = vmatprep.subr.mxu0 0.0
        %1398 = vmatpush1.msra.mxu0 %v1238
        %1399 = vmatprep.subr.mxu0 0.0
        %1400 = vmatpush1.msra.mxu0 %v1239
        %1401 = vmatprep.subr.mxu0 0.0
        %1402 = vmatpush1.msra.mxu0 %v1240
        %1403 = vmatprep.subr.mxu0 0.0
        %1404 = vmatpush1.msra.mxu0 %v1241
        %1405 = vmatprep.mubr.f32.mxu0 %v1169
        %1406 = vmatmul.mubr.f32.gmra.mrb[0].mxu0 %v1168
        %v1407 = vpop.f32.mrb[0].mxu0
        %v1408 = vadd.f32 %v1333, %v1407
        %v1409 = vpop.f32.mrb[0].mxu0
        %1410 = vmatprep.mubr.f32.mxu0 %v1175
        %1411 = vmatmul.mubr.f32.gmra.mrb[0].mxu0 %v1174
        %v1412 = vpop.f32.mrb[0].mxu0
        %v1413 = vadd.f32 %v1338, %v1412
        %v1414 = vpop.f32.mrb[0].mxu0
        %1415 = vdwg.mxu0
        %1416 = vmatprep.subr.mxu0 0.0
        %1417 = vmatpush1.msra.mxu0 %v1242
        %1418 = vmatprep.subr.mxu0 0.0
        %1419 = vmatpush1.msra.mxu0 %v1243
        %1420 = vmatprep.subr.mxu0 0.0
        %1421 = vmatpush1.msra.mxu0 %v1244
        %1422 = vmatprep.subr.mxu0 0.0
        %1423 = vmatpush1.msra.mxu0 %v1245
        %1424 = vmatprep.subr.mxu0 0.0
        %1425 = vmatpush1.msra.mxu0 %v1246
        %1426 = vmatprep.subr.mxu0 0.0
        %1427 = vmatpush1.msra.mxu0 %v1247
        %1428 = vmatprep.subr.mxu0 0.0
        %1429 = vmatpush1.msra.mxu0 %v1248
        %1430 = vmatprep.subr.mxu0 0.0
        %1431 = vmatpush1.msra.mxu0 %v1249
        %1432 = vmatprep.subr.mxu0 0.0
        %1433 = vmatpush1.msra.mxu0 %v1250
        %1434 = vmatprep.subr.mxu0 0.0
        %1435 = vmatpush1.msra.mxu0 %v1251
        %1436 = vmatprep.subr.mxu0 0.0
        %1437 = vmatpush1.msra.mxu0 %v1252
        %1438 = vmatprep.subr.mxu0 0.0
        %1439 = vmatpush1.msra.mxu0 %v1253
        %1440 = vmatprep.subr.mxu0 0.0
        %1441 = vmatpush1.msra.mxu0 %v1254
        %1442 = vmatprep.subr.mxu0 0.0
        %1443 = vmatpush1.msra.mxu0 %v1255
        %1444 = vmatprep.subr.mxu0 0.0
        %1445 = vmatpush1.msra.mxu0 %v1256
        %1446 = vmatprep.subr.mxu0 0.0
        %1447 = vmatpush1.msra.mxu0 %v1257
        %1448 = vmatprep.subr.mxu0 0.0
        %1449 = vmatpush1.msra.mxu0 %v1258
        %1450 = vmatprep.subr.mxu0 0.0
        %1451 = vmatpush1.msra.mxu0 0.0
        %1452 = vmatprep.subr.mxu0 0.0
        %1453 = vmatpush1.msra.mxu0 0.0
        %1454 = vmatprep.subr.mxu0 0.0
        %1455 = vmatpush1.msra.mxu0 0.0
        %1456 = vmatprep.subr.mxu0 0.0
        %1457 = vmatpush1.msra.mxu0 0.0
        %1458 = vmatprep.subr.mxu0 0.0
        %1459 = vmatpush1.msra.mxu0 0.0
        %1460 = vmatprep.subr.mxu0 0.0
        %1461 = vmatpush1.msra.mxu0 0.0
        %1462 = vmatprep.subr.mxu0 0.0
        %1463 = vmatpush1.msra.mxu0 0.0
        %1464 = vmatprep.subr.mxu0 0.0
        %1465 = vmatpush1.msra.mxu0 0.0
        %1466 = vmatprep.subr.mxu0 0.0
        %1467 = vmatpush1.msra.mxu0 0.0
        %1468 = vmatprep.subr.mxu0 0.0
        %1469 = vmatpush1.msra.mxu0 0.0
        %1470 = vmatprep.subr.mxu0 0.0
        %1471 = vmatpush1.msra.mxu0 0.0
        %1472 = vmatprep.subr.mxu0 0.0
        %1473 = vmatpush1.msra.mxu0 0.0
        %1474 = vmatprep.subr.mxu0 0.0
        %1475 = vmatpush1.msra.mxu0 0.0
        %1476 = vmatprep.subr.mxu0 0.0
        %1477 = vmatpush1.msra.mxu0 0.0
        %1478 = vmatprep.subr.mxu0 0.0
        %1479 = vmatpush1.msra.mxu0 0.0
        %1480 = vmatprep.mubr.f32.mxu0 %v1261
        %1481 = vmatmul.mubr.f32.gmra.mrb[0].mxu0 %v1170
        %v1482 = vpop.f32.mrb[0].mxu0
        %v1483 = vadd.f32 %v1408, %v1482
        %v1484 = vpop.f32.mrb[0].mxu0
        %1485 = vmatprep.mubr.f32.mxu0 %v1264
        %1486 = vmatmul.mubr.f32.gmra.mrb[0].mxu0 %v1176
        %v1487 = vpop.f32.mrb[0].mxu0
        %v1488 = vadd.f32 %v1413, %v1487
        %v1489 = vpop.f32.mrb[0].mxu0
        %1490 = vdwg.mxu0
        %1491 = vst [vmem:[%s175] sm:$0xff] %v1483
        %1492 = vst [vmem:[%s175 + $0x8] sm:$0xff] %v1488
        %s1493 = sand.u32 %s75, 1
        %s1494 = scalar_lea.sflag [#allocation5], %s1493
        %s1495 = sand.u32 %s75, 1
        %s1496 = smul.addr %s1495, 16
        %s1497 = scalar_lea.vmem [#allocation8], %s1496
        // Predicated region
        $region37: #{tpu_custom_call.1} parent=27 // pred_check
          %p1498 = pneg %p85
        $region38: #{tpu_custom_call.1} parent=27 // pred_check_branch
          %1500 = sbr.rel (%p1498) target = $region40
        $region39: #{tpu_custom_call.1} parent=27 // pred_region
          %s1502 = ssub.s32 256, 256
          %1503 = vsyncadd %s1494, %s1502
          %s1504 = smul.addr %s20, 128
          %s1505 = scalar_lea.hbm %s2, %s1504
          %s1506 = sshll.u32 %s1497, 4
          %s1507 = int_to_ptr.vmem [resolvable:$true] %s1506
          %1512 = dma.vmem_to_hbm [thread:$0]  %s1507, 256, %s1505, %s1494, 128, 256, 8
        $region40: #{tpu_custom_call.1} parent=27 // pred_fallthru
          _
      $region28: #{tpu_custom_call.1} parent=5 // pred_fallthru
        _
      %p1513 = scmp.le.s32.totalorder 2, %s15
      // Predicated region
      $region41: #{tpu_custom_call.1} parent=5 // pred_check
        %p1514 = pneg %p1513
      $region42: #{tpu_custom_call.1} parent=5 // pred_check_branch
        %1516 = sbr.rel (%p1514) target = $region44
      $region43: #{tpu_custom_call.1} parent=5 // pred_region
        %s1517 = ssub.s32 %s15, 2
        // Predicated region
        $region45: #{tpu_custom_call.1} parent=43 // pred_check
          %p1518 = pneg %p91
        $region46: #{tpu_custom_call.1} parent=43 // pred_check_branch
          %1520 = sbr.rel (%p1518) target = $region48
        $region47: #{tpu_custom_call.1} parent=43 // pred_region
          %s1521 = sand.u32 %s76, 1
          %s1522 = scalar_lea.sflag [#allocation5], %s1521
          %s1523 = sand.u32 %s76, 1
          %s1524 = smul.addr %s1523, 16
          %s1525 = scalar_lea.vmem [#allocation8], %s1524
          %1526 = dma.done %s1522, 256
        $region48: #{tpu_custom_call.1} parent=43 // pred_fallthru
          _
      $region44: #{tpu_custom_call.1} parent=5 // pred_fallthru
        _
    $region6: #{tpu_custom_call.1} parent=1 // loop_footer
      %s19 = sadd.s32 1, %s15
    $region7: #{tpu_custom_call.1} parent=1 // loop_footer_branch
      %14 = sbr.rel target = $region3
    $region8: #{tpu_custom_call.1} parent=1 // loop_exit
      _
    %1527 = vsyncpa [#allocation4], 1
    %s1528 = scalar_lea.sflag [#allocation4], 1
    %1529 = vsyncpa %s1528, 1
    %1530 = vsyncpa [#allocation7], 1
    %1531 = vsyncpa [#allocation5], 1
    %s1532 = scalar_lea.sflag [#allocation5], 1
    %1533 = vsyncpa %s1532, 1

</llo_original>
